<compile_context>
chip_gen: v7x
topology: tpu7x:2x2x1
jax: 0.10.0
libtpu: 0.0.40
codegen_flags: <defaults>
</compile_context>

<pallas_src>
import functools

import jax
import jax.numpy as jnp
from jax.experimental import pallas as pl
from jax.experimental.pallas import tpu as pltpu


# ----------------------- host-side weight preprocessing ---------------------

def _banded_weights(w_oihw, W):
    """(Cout, Cin, 3, 3) -> (3*W*Cin, W*Cout) stacked banded matrices, bf16.

    Per ky tap:  R[ky][wi*Cin + ci, wo*Cout + co] = w[co, ci, ky, wi - wo + 1]
    (zero outside the 3-wide band -> kx taps + W-border padding folded in).
    The 3 ky blocks are stacked along K so each conv is ONE deep MXU matmul
    against [up ; center ; down].  Weight-only transform; in a real model it
    is computed once and cached alongside the weights.
    """
    Cout, Cin, KH, KW = w_oihw.shape
    wk = jnp.transpose(w_oihw, (2, 3, 1, 0))              # (ky, kx, Cin, Cout)
    wi = jnp.arange(W)[:, None]
    wo = jnp.arange(W)[None, :]
    kx = wi - wo + 1                                      # padding = 1
    valid = (kx >= 0) & (kx < KW)
    blocks = wk[:, jnp.clip(kx, 0, KW - 1)]               # (ky, wi, wo, Cin, Cout)
    blocks = jnp.where(valid[None, :, :, None, None], blocks, 0.0)
    blocks = jnp.transpose(blocks, (0, 1, 3, 2, 4))       # (ky, wi, Cin, wo, Cout)
    return blocks.reshape(KH * W * Cin, W * Cout).astype(jnp.bfloat16)


# --------------------------------- kernel -----------------------------------

def _basic_block_kernel(x_ref, rb1_ref, rb2_ref, g1_ref, b1_ref, g2_ref, b2_ref,
                        out_ref, *, N, H, W, C, eps):
    NH, WC = N * H, W * C
    inv_cnt = jnp.float32(1.0 / (N * H * W))

    x = x_ref[...].astype(jnp.float32)                    # (NH, WC) lane-dense

    # Per-row image-row index h.  The masks implement the H-border zero padding
    # AND kill the cross-image rows that the cyclic roll wraps in.
    hh = jax.lax.broadcasted_iota(jnp.int32, (NH, 1), 0) % H
    not_top = (hh > 0).astype(jnp.float32)                # rows with a valid h-1
    not_bot = (hh < H - 1).astype(jnp.float32)            # rows with a valid h+1

    # Channel fold / expand between the lane-dense (w, c) layout and (c,).
    fold = (jax.lax.broadcasted_iota(jnp.int32, (WC, C), 0) % C
            == jax.lax.broadcasted_iota(jnp.int32, (WC, C), 1)).astype(jnp.float32)
    expand = (jax.lax.broadcasted_iota(jnp.int32, (C, WC), 1) % C
              == jax.lax.broadcasted_iota(jnp.int32, (C, WC), 0)).astype(jnp.float32)

    def conv3x3(rows, rb_ref):
        # ky taps: XLU sublane rotate + VPU border mask (no selector matmuls),
        # then ONE deep bf16 MXU matmul (K = 3*W*C) with f32 accumulation.
        up = pltpu.roll(rows, shift=1, axis=0) * not_top        # image row h-1
        dn = pltpu.roll(rows, shift=NH - 1, axis=0) * not_bot   # image row h+1
        xcat = jnp.concatenate([up, rows, dn], axis=1).astype(jnp.bfloat16)
        return jnp.dot(xcat, rb_ref[...], preferred_element_type=jnp.float32)

    def bn(y, g_ref, b_ref):
        # Training-mode BatchNorm2d: per-channel batch stats over N,H,W in one
        # pass (sum & sum-of-squares), all in f32.  Both channel reductions in
        # one matmul; both lane broadcasts in one matmul.
        st = jnp.concatenate(
            [jnp.sum(y, axis=0, keepdims=True),
             jnp.sum(y * y, axis=0, keepdims=True)], axis=0)          # (2, WC)
        stc = jnp.dot(st, fold, preferred_element_type=jnp.float32) * inv_cnt
        mean = stc[0:1]                                               # (1, C)
        var = jnp.maximum(stc[1:2] - mean * mean, 0.0)                # clamp >= 0
        scale = g_ref[...] * jax.lax.rsqrt(var + eps)                 # (1, C)
        shift = b_ref[...] - mean * scale                             # (1, C)
        ssw = jnp.dot(jnp.concatenate([scale, shift], axis=0), expand,
                      preferred_element_type=jnp.float32)             # (2, WC)
        return y * ssw[0:1] + ssw[1:2]

    # conv1 -> bn1 -> relu        (intermediate never leaves VMEM)
    y1 = jnp.maximum(bn(conv3x3(x, rb1_ref), g1_ref, b1_ref), 0.0)
    # conv2 -> bn2 -> + identity residual -> relu
    y2 = bn(conv3x3(y1, rb2_ref), g2_ref, b2_ref) + x
    out_ref[...] = jnp.maximum(y2, 0.0).astype(out_ref.dtype)         # lane-dense store


# -------------------------------- wrapper -----------------------------------

def basic_block_forward_nhwc(x_nhwc, params):
    """NHWC in / NHWC out.  The reshape to lane-dense (N*H, W*C) rows is free
    (contiguous); NCHW callers should transpose once at the model boundary."""
    N, H, W, Cin = x_nhwc.shape
    C = params["w1"].shape[0]                 # conv weight: (Cout, Cin, 3, 3)
    assert Cin == C, "identity residual requires inplanes == planes"

    x_rows = x_nhwc.reshape(N * H, W * C)
    rb1 = _banded_weights(params["w1"], W)    # (3*W*C, W*C) bf16
    rb2 = _banded_weights(params["w2"], W)

    vmem = pl.BlockSpec(memory_space=pltpu.MemorySpace.VMEM)
    out_rows = pl.pallas_call(
        functools.partial(_basic_block_kernel, N=N, H=H, W=W, C=C, eps=1e-5),
        out_shape=jax.ShapeDtypeStruct((N * H, W * C), x_nhwc.dtype),
        in_specs=[vmem] * 7,
        out_specs=vmem,
        compiler_params=pltpu.CompilerParams(
            vmem_limit_bytes=32 * 1024 * 1024),
    )(x_rows, rb1, rb2,
      params["g1"].reshape(1, C), params["b1"].reshape(1, C),
      params["g2"].reshape(1, C), params["b2"].reshape(1, C))

    return out_rows.reshape(N, H, W, C)


# --------------------------- pure-JAX reference -----------------------------

def reference_forward_nhwc(x, params, eps=1e-5):
    def conv(a, w):
        return jax.lax.conv_general_dilated(
            a, w, window_strides=(1, 1), padding=((1, 1), (1, 1)),
            dimension_numbers=("NHWC", "OIHW", "NHWC"))

    def bn(a, g, b):
        mean = jnp.mean(a, axis=(0, 1, 2), keepdims=True)
        var = jnp.mean(jnp.square(a - mean), axis=(0, 1, 2), keepdims=True)
        return ((a - mean) * jax.lax.rsqrt(var + eps) * g.reshape(1, 1, 1, -1)
                + b.reshape(1, 1, 1, -1))

    y = jnp.maximum(bn(conv(x, params["w1"]), params["g1"], params["b1"]), 0.0)
    y = bn(conv(y, params["w2"]), params["g2"], params["b2"]) + x
    return jnp.maximum(y, 0.0)


# --------------------------------- main -------------------------------------

if __name__ == "__main__":
    N, C, H, W = 2, 16, 16, 16          # inplanes == planes == 16, stride 1
    key = jax.random.PRNGKey(0)
    kx, kw1, kw2, kg1, kb1, kg2, kb2 = jax.random.split(key, 7)

    x = jax.random.normal(kx, (N, H, W, C), jnp.float32)      # NHWC boundary
    params = {
        "w1": 0.1 * jax.random.normal(kw1, (C, C, 3, 3), jnp.float32),
        "w2": 0.1 * jax.random.normal(kw2, (C, C, 3, 3), jnp.float32),
        "g1": 1.0 + 0.05 * jax.random.normal(kg1, (C,), jnp.float32),
        "b1": 0.05 * jax.random.normal(kb1, (C,), jnp.float32),
        "g2": 1.0 + 0.05 * jax.random.normal(kg2, (C,), jnp.float32),
        "b2": 0.05 * jax.random.normal(kb2, (C,), jnp.float32),
    }

    fwd = jax.jit(basic_block_forward_nhwc)
    out = jax.block_until_ready(fwd(x, params))
    ref = jax.block_until_ready(reference_forward_nhwc(x, params))

    assert out.shape == (N, H, W, C), out.shape
    max_err = float(jnp.max(jnp.abs(out - ref)))
    # Tolerance reflects bf16 MXU operands (f32 accumulation); BN/residual in f32.
    assert jnp.allclose(out, ref, rtol=5e-2, atol=5e-2), max_err

    print("KERNEL_OK")
</pallas_src>

<mosaic_0001>
module attributes {stable_mosaic.version = 11 : i64} {
  func.func @_basic_block_kernel(%arg0: memref<32x256xf32, #tpu.memory_space<vmem>>, %arg1: memref<768x256xbf16, #tpu.memory_space<vmem>>, %arg2: memref<768x256xbf16, #tpu.memory_space<vmem>>, %arg3: memref<1x16xf32, #tpu.memory_space<vmem>>, %arg4: memref<1x16xf32, #tpu.memory_space<vmem>>, %arg5: memref<1x16xf32, #tpu.memory_space<vmem>>, %arg6: memref<1x16xf32, #tpu.memory_space<vmem>>, %arg7: memref<32x256xf32, #tpu.memory_space<vmem>>) attributes {dimension_semantics = [], scalar_prefetch = 0 : i64, scratch_operands = 0 : i64, tpu.core_type = #tpu.core_type<tc>} {
    %c0 = arith.constant 0 : index
    %c0_0 = arith.constant 0 : index
    %0 = vector.load %arg0[%c0, %c0_0] : memref<32x256xf32, #tpu.memory_space<vmem>>, vector<32x256xf32>
    %1 = tpu.iota {dimensions = array<i32: 0>} : vector<32x1xi32>
    %c16_i32 = arith.constant 16 : i32
    %c0_i32 = arith.constant 0 : i32
    %2 = arith.cmpi eq, %c16_i32, %c0_i32 : i32
    %c1_i32 = arith.constant 1 : i32
    %3 = arith.select %2, %c1_i32, %c16_i32 : i32
    %4 = vector.broadcast %3 : i32 to vector<32x1xi32>
    %5 = arith.remsi %1, %4 : vector<32x1xi32>
    %c0_i32_1 = arith.constant 0 : i32
    %6 = vector.broadcast %c0_i32_1 : i32 to vector<32x1xi32>
    %7 = arith.cmpi ne, %5, %6 : vector<32x1xi32>
    %c0_i32_2 = arith.constant 0 : i32
    %8 = vector.broadcast %c0_i32_2 : i32 to vector<32x1xi32>
    %9 = arith.cmpi slt, %5, %8 : vector<32x1xi32>
    %c0_i32_3 = arith.constant 0 : i32
    %10 = arith.cmpi slt, %3, %c0_i32_3 : i32
    %11 = vector.broadcast %10 : i1 to vector<32x1xi1>
    %12 = vector.broadcast %11 : vector<32x1xi1> to vector<32x1xi1>
    %13 = arith.xori %9, %12 : vector<32x1xi1>
    %14 = arith.andi %13, %7 : vector<32x1xi1>
    %15 = vector.broadcast %3 : i32 to vector<32x1xi32>
    %16 = arith.addi %5, %15 : vector<32x1xi32>
    %17 = arith.select %14, %16, %5 : vector<32x1xi1>, vector<32x1xi32>
    %c0_i32_4 = arith.constant 0 : i32
    %18 = vector.broadcast %c0_i32_4 : i32 to vector<32x1xi32>
    %19 = arith.cmpi sgt, %17, %18 : vector<32x1xi32>
    %20 = arith.extui %19 : vector<32x1xi1> to vector<32x1xi32>
    %21 = arith.sitofp %20 : vector<32x1xi32> to vector<32x1xf32>
    %c15_i32 = arith.constant 15 : i32
    %22 = vector.broadcast %c15_i32 : i32 to vector<32x1xi32>
    %23 = arith.cmpi slt, %17, %22 : vector<32x1xi32>
    %24 = arith.extui %23 : vector<32x1xi1> to vector<32x1xi32>
    %25 = arith.sitofp %24 : vector<32x1xi32> to vector<32x1xf32>
    %26 = tpu.iota {dimensions = array<i32: 0>} : vector<256x16xi32>
    %c16_i32_5 = arith.constant 16 : i32
    %c0_i32_6 = arith.constant 0 : i32
    %27 = arith.cmpi eq, %c16_i32_5, %c0_i32_6 : i32
    %c1_i32_7 = arith.constant 1 : i32
    %28 = arith.select %27, %c1_i32_7, %c16_i32_5 : i32
    %29 = vector.broadcast %28 : i32 to vector<256x16xi32>
    %30 = arith.remsi %26, %29 : vector<256x16xi32>
    %c0_i32_8 = arith.constant 0 : i32
    %31 = vector.broadcast %c0_i32_8 : i32 to vector<256x16xi32>
    %32 = arith.cmpi ne, %30, %31 : vector<256x16xi32>
    %c0_i32_9 = arith.constant 0 : i32
    %33 = vector.broadcast %c0_i32_9 : i32 to vector<256x16xi32>
    %34 = arith.cmpi slt, %30, %33 : vector<256x16xi32>
    %c0_i32_10 = arith.constant 0 : i32
    %35 = arith.cmpi slt, %28, %c0_i32_10 : i32
    %36 = vector.broadcast %35 : i1 to vector<256x16xi1>
    %37 = vector.broadcast %36 : vector<256x16xi1> to vector<256x16xi1>
    %38 = arith.xori %34, %37 : vector<256x16xi1>
    %39 = arith.andi %38, %32 : vector<256x16xi1>
    %40 = vector.broadcast %28 : i32 to vector<256x16xi32>
    %41 = arith.addi %30, %40 : vector<256x16xi32>
    %42 = arith.select %39, %41, %30 : vector<256x16xi1>, vector<256x16xi32>
    %43 = tpu.iota {dimensions = array<i32: 1>} : vector<256x16xi32>
    %44 = arith.cmpi eq, %42, %43 : vector<256x16xi32>
    %45 = arith.extui %44 : vector<256x16xi1> to vector<256x16xi32>
    %46 = arith.sitofp %45 : vector<256x16xi32> to vector<256x16xf32>
    %47 = tpu.iota {dimensions = array<i32: 1>} : vector<16x256xi32>
    %c16_i32_11 = arith.constant 16 : i32
    %c0_i32_12 = arith.constant 0 : i32
    %48 = arith.cmpi eq, %c16_i32_11, %c0_i32_12 : i32
    %c1_i32_13 = arith.constant 1 : i32
    %49 = arith.select %48, %c1_i32_13, %c16_i32_11 : i32
    %50 = vector.broadcast %49 : i32 to vector<16x256xi32>
    %51 = arith.remsi %47, %50 : vector<16x256xi32>
    %c0_i32_14 = arith.constant 0 : i32
    %52 = vector.broadcast %c0_i32_14 : i32 to vector<16x256xi32>
    %53 = arith.cmpi ne, %51, %52 : vector<16x256xi32>
    %c0_i32_15 = arith.constant 0 : i32
    %54 = vector.broadcast %c0_i32_15 : i32 to vector<16x256xi32>
    %55 = arith.cmpi slt, %51, %54 : vector<16x256xi32>
    %c0_i32_16 = arith.constant 0 : i32
    %56 = arith.cmpi slt, %49, %c0_i32_16 : i32
    %57 = vector.broadcast %56 : i1 to vector<16x256xi1>
    %58 = vector.broadcast %57 : vector<16x256xi1> to vector<16x256xi1>
    %59 = arith.xori %55, %58 : vector<16x256xi1>
    %60 = arith.andi %59, %53 : vector<16x256xi1>
    %61 = vector.broadcast %49 : i32 to vector<16x256xi32>
    %62 = arith.addi %51, %61 : vector<16x256xi32>
    %63 = arith.select %60, %62, %51 : vector<16x256xi1>, vector<16x256xi32>
    %64 = tpu.iota {dimensions = array<i32: 0>} : vector<16x256xi32>
    %65 = arith.cmpi eq, %63, %64 : vector<16x256xi32>
    %66 = arith.extui %65 : vector<16x256xi1> to vector<16x256xi32>
    %67 = arith.sitofp %66 : vector<16x256xi32> to vector<16x256xf32>
    %c1_i32_17 = arith.constant 1 : i32
    %68 = tpu.dynamic_rotate %0 by %c1_i32_17 dim 0 : vector<32x256xf32>, i32 -> vector<32x256xf32>
    %69 = vector.broadcast %21 : vector<32x1xf32> to vector<32x256xf32>
    %70 = arith.mulf %68, %69 : vector<32x256xf32>
    %c31_i32 = arith.constant 31 : i32
    %71 = tpu.dynamic_rotate %0 by %c31_i32 dim 0 : vector<32x256xf32>, i32 -> vector<32x256xf32>
    %72 = vector.broadcast %25 : vector<32x1xf32> to vector<32x256xf32>
    %73 = arith.mulf %71, %72 : vector<32x256xf32>
    %74 = tpu.concatenate %70, %0, %73 in 1 : vector<32x256xf32>, vector<32x256xf32>, vector<32x256xf32> -> vector<32x768xf32>
    %75 = arith.truncf %74 : vector<32x768xf32> to vector<32x768xbf16>
    %c0_18 = arith.constant 0 : index
    %c0_19 = arith.constant 0 : index
    %76 = vector.load %arg1[%c0_18, %c0_19] : memref<768x256xbf16, #tpu.memory_space<vmem>>, vector<768x256xbf16>
    %cst = arith.constant dense<0.000000e+00> : vector<32x256xf32>
    %77 = tpu.matmul %75, %76, %cst {dimension_numbers = #tpu.dot_dimension_numbers<[1], [0], [0], [1], [0, 0, 1, 1], [], []>} : vector<32x768xbf16>, vector<768x256xbf16>, vector<32x256xf32> -> vector<32x256xf32>
    %cst_20 = arith.constant dense<0.000000e+00> : vector<256xf32>
    %78 = vector.multi_reduction <add>, %77, %cst_20 [0] : vector<32x256xf32> to vector<256xf32>
    %79 = vector.shape_cast %78 : vector<256xf32> to vector<1x256xf32>
    %80 = arith.mulf %77, %77 : vector<32x256xf32>
    %cst_21 = arith.constant dense<0.000000e+00> : vector<256xf32>
    %81 = vector.multi_reduction <add>, %80, %cst_21 [0] : vector<32x256xf32> to vector<256xf32>
    %82 = vector.shape_cast %81 : vector<256xf32> to vector<1x256xf32>
    %83 = tpu.concatenate %79, %82 in 0 : vector<1x256xf32>, vector<1x256xf32> -> vector<2x256xf32>
    %cst_22 = arith.constant dense<0.000000e+00> : vector<2x16xf32>
    %84 = tpu.matmul %83, %46, %cst_22 {dimension_numbers = #tpu.dot_dimension_numbers<[1], [0], [0], [1], [0, 0, 1, 1], [], []>} : vector<2x256xf32>, vector<256x16xf32>, vector<2x16xf32> -> vector<2x16xf32>
    %cst_23 = arith.constant 0.001953125 : f32
    %85 = vector.broadcast %cst_23 : f32 to vector<2x16xf32>
    %86 = arith.mulf %84, %85 : vector<2x16xf32>
    %87 = vector.extract_strided_slice %86 {offsets = [0, 0], sizes = [1, 16], strides = [1, 1]} : vector<2x16xf32> to vector<1x16xf32>
    %88 = vector.extract_strided_slice %86 {offsets = [1, 0], sizes = [1, 16], strides = [1, 1]} : vector<2x16xf32> to vector<1x16xf32>
    %89 = arith.mulf %87, %87 : vector<1x16xf32>
    %90 = arith.subf %88, %89 : vector<1x16xf32>
    %cst_24 = arith.constant 0.000000e+00 : f32
    %91 = vector.broadcast %cst_24 : f32 to vector<1x16xf32>
    %92 = arith.maximumf %90, %91 : vector<1x16xf32>
    %c0_25 = arith.constant 0 : index
    %c0_26 = arith.constant 0 : index
    %93 = vector.load %arg3[%c0_25, %c0_26] : memref<1x16xf32, #tpu.memory_space<vmem>>, vector<1x16xf32>
    %cst_27 = arith.constant 9.99999974E-6 : f32
    %94 = vector.broadcast %cst_27 : f32 to vector<1x16xf32>
    %95 = arith.addf %92, %94 : vector<1x16xf32>
    %96 = math.rsqrt %95 : vector<1x16xf32>
    %97 = arith.mulf %93, %96 : vector<1x16xf32>
    %c0_28 = arith.constant 0 : index
    %c0_29 = arith.constant 0 : index
    %98 = vector.load %arg4[%c0_28, %c0_29] : memref<1x16xf32, #tpu.memory_space<vmem>>, vector<1x16xf32>
    %99 = arith.mulf %87, %97 : vector<1x16xf32>
    %100 = arith.subf %98, %99 : vector<1x16xf32>
    %101 = tpu.concatenate %97, %100 in 0 : vector<1x16xf32>, vector<1x16xf32> -> vector<2x16xf32>
    %cst_30 = arith.constant dense<0.000000e+00> : vector<2x256xf32>
    %102 = tpu.matmul %101, %67, %cst_30 {dimension_numbers = #tpu.dot_dimension_numbers<[1], [0], [0], [1], [0, 0, 1, 1], [], []>} : vector<2x16xf32>, vector<16x256xf32>, vector<2x256xf32> -> vector<2x256xf32>
    %103 = vector.extract_strided_slice %102 {offsets = [0, 0], sizes = [1, 256], strides = [1, 1]} : vector<2x256xf32> to vector<1x256xf32>
    %104 = vector.broadcast %103 : vector<1x256xf32> to vector<32x256xf32>
    %105 = arith.mulf %77, %104 : vector<32x256xf32>
    %106 = vector.extract_strided_slice %102 {offsets = [1, 0], sizes = [1, 256], strides = [1, 1]} : vector<2x256xf32> to vector<1x256xf32>
    %107 = vector.broadcast %106 : vector<1x256xf32> to vector<32x256xf32>
    %108 = arith.addf %105, %107 : vector<32x256xf32>
    %cst_31 = arith.constant 0.000000e+00 : f32
    %109 = vector.broadcast %cst_31 : f32 to vector<32x256xf32>
    %110 = arith.maximumf %108, %109 : vector<32x256xf32>
    %c1_i32_32 = arith.constant 1 : i32
    %111 = tpu.dynamic_rotate %110 by %c1_i32_32 dim 0 : vector<32x256xf32>, i32 -> vector<32x256xf32>
    %112 = vector.broadcast %21 : vector<32x1xf32> to vector<32x256xf32>
    %113 = arith.mulf %111, %112 : vector<32x256xf32>
    %c31_i32_33 = arith.constant 31 : i32
    %114 = tpu.dynamic_rotate %110 by %c31_i32_33 dim 0 : vector<32x256xf32>, i32 -> vector<32x256xf32>
    %115 = vector.broadcast %25 : vector<32x1xf32> to vector<32x256xf32>
    %116 = arith.mulf %114, %115 : vector<32x256xf32>
    %117 = tpu.concatenate %113, %110, %116 in 1 : vector<32x256xf32>, vector<32x256xf32>, vector<32x256xf32> -> vector<32x768xf32>
    %118 = arith.truncf %117 : vector<32x768xf32> to vector<32x768xbf16>
    %c0_34 = arith.constant 0 : index
    %c0_35 = arith.constant 0 : index
    %119 = vector.load %arg2[%c0_34, %c0_35] : memref<768x256xbf16, #tpu.memory_space<vmem>>, vector<768x256xbf16>
    %cst_36 = arith.constant dense<0.000000e+00> : vector<32x256xf32>
    %120 = tpu.matmul %118, %119, %cst_36 {dimension_numbers = #tpu.dot_dimension_numbers<[1], [0], [0], [1], [0, 0, 1, 1], [], []>} : vector<32x768xbf16>, vector<768x256xbf16>, vector<32x256xf32> -> vector<32x256xf32>
    %cst_37 = arith.constant dense<0.000000e+00> : vector<256xf32>
    %121 = vector.multi_reduction <add>, %120, %cst_37 [0] : vector<32x256xf32> to vector<256xf32>
    %122 = vector.shape_cast %121 : vector<256xf32> to vector<1x256xf32>
    %123 = arith.mulf %120, %120 : vector<32x256xf32>
    %cst_38 = arith.constant dense<0.000000e+00> : vector<256xf32>
    %124 = vector.multi_reduction <add>, %123, %cst_38 [0] : vector<32x256xf32> to vector<256xf32>
    %125 = vector.shape_cast %124 : vector<256xf32> to vector<1x256xf32>
    %126 = tpu.concatenate %122, %125 in 0 : vector<1x256xf32>, vector<1x256xf32> -> vector<2x256xf32>
    %cst_39 = arith.constant dense<0.000000e+00> : vector<2x16xf32>
    %127 = tpu.matmul %126, %46, %cst_39 {dimension_numbers = #tpu.dot_dimension_numbers<[1], [0], [0], [1], [0, 0, 1, 1], [], []>} : vector<2x256xf32>, vector<256x16xf32>, vector<2x16xf32> -> vector<2x16xf32>
    %cst_40 = arith.constant 0.001953125 : f32
    %128 = vector.broadcast %cst_40 : f32 to vector<2x16xf32>
    %129 = arith.mulf %127, %128 : vector<2x16xf32>
    %130 = vector.extract_strided_slice %129 {offsets = [0, 0], sizes = [1, 16], strides = [1, 1]} : vector<2x16xf32> to vector<1x16xf32>
    %131 = vector.extract_strided_slice %129 {offsets = [1, 0], sizes = [1, 16], strides = [1, 1]} : vector<2x16xf32> to vector<1x16xf32>
    %132 = arith.mulf %130, %130 : vector<1x16xf32>
    %133 = arith.subf %131, %132 : vector<1x16xf32>
    %cst_41 = arith.constant 0.000000e+00 : f32
    %134 = vector.broadcast %cst_41 : f32 to vector<1x16xf32>
    %135 = arith.maximumf %133, %134 : vector<1x16xf32>
    %c0_42 = arith.constant 0 : index
    %c0_43 = arith.constant 0 : index
    %136 = vector.load %arg5[%c0_42, %c0_43] : memref<1x16xf32, #tpu.memory_space<vmem>>, vector<1x16xf32>
    %cst_44 = arith.constant 9.99999974E-6 : f32
    %137 = vector.broadcast %cst_44 : f32 to vector<1x16xf32>
    %138 = arith.addf %135, %137 : vector<1x16xf32>
    %139 = math.rsqrt %138 : vector<1x16xf32>
    %140 = arith.mulf %136, %139 : vector<1x16xf32>
    %c0_45 = arith.constant 0 : index
    %c0_46 = arith.constant 0 : index
    %141 = vector.load %arg6[%c0_45, %c0_46] : memref<1x16xf32, #tpu.memory_space<vmem>>, vector<1x16xf32>
    %142 = arith.mulf %130, %140 : vector<1x16xf32>
    %143 = arith.subf %141, %142 : vector<1x16xf32>
    %144 = tpu.concatenate %140, %143 in 0 : vector<1x16xf32>, vector<1x16xf32> -> vector<2x16xf32>
    %cst_47 = arith.constant dense<0.000000e+00> : vector<2x256xf32>
    %145 = tpu.matmul %144, %67, %cst_47 {dimension_numbers = #tpu.dot_dimension_numbers<[1], [0], [0], [1], [0, 0, 1, 1], [], []>} : vector<2x16xf32>, vector<16x256xf32>, vector<2x256xf32> -> vector<2x256xf32>
    %146 = vector.extract_strided_slice %145 {offsets = [0, 0], sizes = [1, 256], strides = [1, 1]} : vector<2x256xf32> to vector<1x256xf32>
    %147 = vector.broadcast %146 : vector<1x256xf32> to vector<32x256xf32>
    %148 = arith.mulf %120, %147 : vector<32x256xf32>
    %149 = vector.extract_strided_slice %145 {offsets = [1, 0], sizes = [1, 256], strides = [1, 1]} : vector<2x256xf32> to vector<1x256xf32>
    %150 = vector.broadcast %149 : vector<1x256xf32> to vector<32x256xf32>
    %151 = arith.addf %148, %150 : vector<32x256xf32>
    %152 = arith.addf %151, %0 : vector<32x256xf32>
    %cst_48 = arith.constant 0.000000e+00 : f32
    %153 = vector.broadcast %cst_48 : f32 to vector<32x256xf32>
    %154 = arith.maximumf %152, %153 : vector<32x256xf32>
    %c0_49 = arith.constant 0 : index
    %c0_50 = arith.constant 0 : index
    %155 = vector.load %arg7[%c0_49, %c0_50] : memref<32x256xf32, #tpu.memory_space<vmem>>, vector<32x256xf32>
    tpu.vector_store %arg7[%c0_49, %c0_50], %154 {strides = array<i32>} : memref<32x256xf32, #tpu.memory_space<vmem>>, vector<32x256xf32>,
    return
  }
}

</mosaic_0001>

<llo_original>
// kernel: basic_block_forward_nhwc.1
$region0: #{basic_block_forward_nhwc.1}
  #allocation0 [shape = 'u32[]', space=smem, size = 0x4, offset = 0x4, fixed_abs, tag = 'smem constant byte address 0x4 - core index']
  #allocation1 [shape = 'u32[144,128]{1,0:T(1,128)}', space=vmem, size = 0x12000, scoped, tag = 'internal scratch']
  %s0 = inlined_call_operand.vmem [shape: f32[32,256], index: 0, kind: input, shape index: {}]
  %s1 = inlined_call_operand.vmem [shape: bf16[768,256], index: 1, kind: input, shape index: {}]
  %s2 = inlined_call_operand.vmem [shape: bf16[768,256], index: 2, kind: input, shape index: {}]
  %s3 = inlined_call_operand.vmem [shape: f32[1,16], index: 3, kind: input, shape index: {}]
  %s4 = inlined_call_operand.vmem [shape: f32[1,16], index: 4, kind: input, shape index: {}]
  %s5 = inlined_call_operand.vmem [shape: f32[1,16], index: 5, kind: input, shape index: {}]
  %s6 = inlined_call_operand.vmem [shape: f32[1,16], index: 6, kind: input, shape index: {}]
  %s7 = inlined_call_operand.vmem [shape: f32[32,256], index: 7, kind: output, shape index: {}]
  %s8 = sld [smem:[#allocation0]]
  $region38: #{basic_block_forward_nhwc.1} parent=0
    _
  %s10 = ssub.s32 1, %s8
  %s11 = scalar_select 0, %s10, %s8
  // Predicated region
  $region2: #{basic_block_forward_nhwc.1} parent=0 // pred_check
    _
  $region3: #{basic_block_forward_nhwc.1} parent=0 // pred_check_branch
    %13 = sbr.rel (0) target = $region5
  $region4: #{basic_block_forward_nhwc.1} parent=0 // pred_region
    _
  $region5: #{basic_block_forward_nhwc.1} parent=0 // pred_fallthru
    _
  // Predicated region
  $region6: #{basic_block_forward_nhwc.1} parent=0 // pred_check
    _
  $region7: #{basic_block_forward_nhwc.1} parent=0 // pred_check_branch
    %15 = sbr.rel (0) target = $region9
  $region8: #{basic_block_forward_nhwc.1} parent=0 // pred_region
    _
  $region9: #{basic_block_forward_nhwc.1} parent=0 // pred_fallthru
    _
  // Predicated region
  $region10: #{basic_block_forward_nhwc.1} parent=0 // pred_check
    _
  $region11: #{basic_block_forward_nhwc.1} parent=0 // pred_check_branch
    %17 = sbr.rel (0) target = $region13
  $region12: #{basic_block_forward_nhwc.1} parent=0 // pred_region
    _
  $region13: #{basic_block_forward_nhwc.1} parent=0 // pred_fallthru
    _
  // Predicated region
  $region14: #{basic_block_forward_nhwc.1} parent=0 // pred_check
    _
  $region15: #{basic_block_forward_nhwc.1} parent=0 // pred_check_branch
    %19 = sbr.rel (0) target = $region17
  $region16: #{basic_block_forward_nhwc.1} parent=0 // pred_region
    _
  $region17: #{basic_block_forward_nhwc.1} parent=0 // pred_fallthru
    _
  // Predicated region
  $region18: #{basic_block_forward_nhwc.1} parent=0 // pred_check
    _
  $region19: #{basic_block_forward_nhwc.1} parent=0 // pred_check_branch
    %21 = sbr.rel (0) target = $region21
  $region20: #{basic_block_forward_nhwc.1} parent=0 // pred_region
    _
  $region21: #{basic_block_forward_nhwc.1} parent=0 // pred_fallthru
    _
  // Predicated region
  $region22: #{basic_block_forward_nhwc.1} parent=0 // pred_check
    _
  $region23: #{basic_block_forward_nhwc.1} parent=0 // pred_check_branch
    %23 = sbr.rel (0) target = $region25
  $region24: #{basic_block_forward_nhwc.1} parent=0 // pred_region
    _
  $region25: #{basic_block_forward_nhwc.1} parent=0 // pred_fallthru
    _
  // Predicated region
  $region26: #{basic_block_forward_nhwc.1} parent=0 // pred_check
    _
  $region27: #{basic_block_forward_nhwc.1} parent=0 // pred_check_branch
    %25 = sbr.rel (0) target = $region29
  $region28: #{basic_block_forward_nhwc.1} parent=0 // pred_region
    _
  $region29: #{basic_block_forward_nhwc.1} parent=0 // pred_fallthru
    _
  %v26 = vld [vmem:[%s0] sm:$0xff]
  %v27 = vld [vmem:[%s0 + $0x8] sm:$0xff]
  %v28 = vld [vmem:[%s0 + $0x10] sm:$0xff]
  %v29 = vld [vmem:[%s0 + $0x18] sm:$0xff]
  %v30 = vld [vmem:[%s0 + $0x20] sm:$0xff]
  %v31 = vld [vmem:[%s0 + $0x28] sm:$0xff]
  %v32 = vld [vmem:[%s0 + $0x30] sm:$0xff]
  %v33 = vld [vmem:[%s0 + $0x38] sm:$0xff]
  %v34 = vlaneseq
  %v35 = vshrl.u32 %v34, 7
  %v36 = vadd.s32 %v35, 8
  %v37 = vadd.s32 %v35, 16
  %v38 = vadd.s32 %v35, 24
  %vm39 = vcmp.lt.s32.totalorder %v35, 0
  %v40 = vsub.s32 0, %v35
  %v41 = vsel %vm39, %v40, %v35
  %v42 = vshrl.u32 %v41, 4
  %v43 = vand.u32 %v41, 15
  %v44 = vsub.s32 0, %v43
  %v45 = vsel %vm39, %v44, %v43
  %vm46 = vcmp.lt.s32.totalorder %v36, 0
  %v47 = vsub.s32 0, %v36
  %v48 = vsel %vm46, %v47, %v36
  %v49 = vshrl.u32 %v48, 4
  %v50 = vand.u32 %v48, 15
  %v51 = vsub.s32 0, %v50
  %v52 = vsel %vm46, %v51, %v50
  %vm53 = vcmp.lt.s32.totalorder %v37, 0
  %v54 = vsub.s32 0, %v37
  %v55 = vsel %vm53, %v54, %v37
  %v56 = vshrl.u32 %v55, 4
  %v57 = vand.u32 %v55, 15
  %v58 = vsub.s32 0, %v57
  %v59 = vsel %vm53, %v58, %v57
  %vm60 = vcmp.lt.s32.totalorder %v38, 0
  %v61 = vsub.s32 0, %v38
  %v62 = vsel %vm60, %v61, %v38
  %v63 = vshrl.u32 %v62, 4
  %v64 = vand.u32 %v62, 15
  %v65 = vsub.s32 0, %v64
  %v66 = vsel %vm60, %v65, %v64
  %vm67 = vcmp.ne.s32.totalorder %v45, 0
  %vm68 = vcmp.ne.s32.totalorder %v52, 0
  %vm69 = vcmp.ne.s32.totalorder %v59, 0
  %vm70 = vcmp.ne.s32.totalorder %v66, 0
  %vm71 = vcmp.lt.s32.totalorder %v45, 0
  %vm72 = vcmp.lt.s32.totalorder %v52, 0
  %vm73 = vcmp.lt.s32.totalorder %v59, 0
  %vm74 = vcmp.lt.s32.totalorder %v66, 0
  %vm75 = vmand %vm71, %vm67
  %vm76 = vmand %vm72, %vm68
  %vm77 = vmand %vm73, %vm69
  %vm78 = vmand %vm74, %vm70
  %v79 = vadd.s32 %v45, 16
  %v80 = vadd.s32 %v52, 16
  %v81 = vadd.s32 %v59, 16
  %v82 = vadd.s32 %v66, 16
  %v83 = vsel %vm75, %v79, %v45
  %v84 = vsel %vm76, %v80, %v52
  %v85 = vsel %vm77, %v81, %v59
  %v86 = vsel %vm78, %v82, %v66
  %vm87 = vcmp.gt.s32.totalorder %v83, 0
  %vm88 = vcmp.gt.s32.totalorder %v84, 0
  %vm89 = vcmp.gt.s32.totalorder %v85, 0
  %vm90 = vcmp.gt.s32.totalorder %v86, 0
  %v91 = vsel %vm87, 1, 0
  %v92 = vsel %vm88, 1, 0
  %v93 = vsel %vm89, 1, 0
  %v94 = vsel %vm90, 1, 0
  %v95 = vcvt.s32.f32 %v91
  %v96 = vcvt.s32.f32 %v92
  %v97 = vcvt.s32.f32 %v93
  %v98 = vcvt.s32.f32 %v94
  %vm99 = vcmp.lt.s32.totalorder %v83, 15
  %vm100 = vcmp.lt.s32.totalorder %v84, 15
  %vm101 = vcmp.lt.s32.totalorder %v85, 15
  %vm102 = vcmp.lt.s32.totalorder %v86, 15
  %v103 = vsel %vm99, 1, 0
  %v104 = vsel %vm100, 1, 0
  %v105 = vsel %vm101, 1, 0
  %v106 = vsel %vm102, 1, 0
  %v107 = vcvt.s32.f32 %v103
  %v108 = vcvt.s32.f32 %v104
  %v109 = vcvt.s32.f32 %v105
  %v110 = vcvt.s32.f32 %v106
  %v111 = vadd.s32 %v35, 32
  %v112 = vadd.s32 %v35, 40
  %v113 = vadd.s32 %v35, 48
  %v114 = vadd.s32 %v35, 56
  %v115 = vadd.s32 %v35, 64
  %v116 = vadd.s32 %v35, 72
  %v117 = vadd.s32 %v35, 80
  %v118 = vadd.s32 %v35, 88
  %v119 = vadd.s32 %v35, 96
  %v120 = vadd.s32 %v35, 104
  %v121 = vadd.s32 %v35, 112
  %v122 = vadd.s32 %v35, 120
  %v123 = vadd.s32 %v35, 128
  %v124 = vadd.s32 %v35, 136
  %v125 = vadd.s32 %v35, 144
  %v126 = vadd.s32 %v35, 152
  %v127 = vadd.s32 %v35, 160
  %v128 = vadd.s32 %v35, 168
  %v129 = vadd.s32 %v35, 176
  %v130 = vadd.s32 %v35, 184
  %v131 = vadd.s32 %v35, 192
  %v132 = vadd.s32 %v35, 200
  %v133 = vadd.s32 %v35, 208
  %v134 = vadd.s32 %v35, 216
  %v135 = vadd.s32 %v35, 224
  %v136 = vadd.s32 %v35, 232
  %v137 = vadd.s32 %v35, 240
  %v138 = vadd.s32 %v35, 248
  %vm139 = vcmp.lt.s32.totalorder %v111, 0
  %v140 = vsub.s32 0, %v111
  %v141 = vsel %vm139, %v140, %v111
  %v142 = vshrl.u32 %v141, 4
  %v143 = vand.u32 %v141, 15
  %v144 = vsub.s32 0, %v143
  %v145 = vsel %vm139, %v144, %v143
  %vm146 = vcmp.lt.s32.totalorder %v112, 0
  %v147 = vsub.s32 0, %v112
  %v148 = vsel %vm146, %v147, %v112
  %v149 = vshrl.u32 %v148, 4
  %v150 = vand.u32 %v148, 15
  %v151 = vsub.s32 0, %v150
  %v152 = vsel %vm146, %v151, %v150
  %vm153 = vcmp.lt.s32.totalorder %v113, 0
  %v154 = vsub.s32 0, %v113
  %v155 = vsel %vm153, %v154, %v113
  %v156 = vshrl.u32 %v155, 4
  %v157 = vand.u32 %v155, 15
  %v158 = vsub.s32 0, %v157
  %v159 = vsel %vm153, %v158, %v157
  %vm160 = vcmp.lt.s32.totalorder %v114, 0
  %v161 = vsub.s32 0, %v114
  %v162 = vsel %vm160, %v161, %v114
  %v163 = vshrl.u32 %v162, 4
  %v164 = vand.u32 %v162, 15
  %v165 = vsub.s32 0, %v164
  %v166 = vsel %vm160, %v165, %v164
  %vm167 = vcmp.lt.s32.totalorder %v115, 0
  %v168 = vsub.s32 0, %v115
  %v169 = vsel %vm167, %v168, %v115
  %v170 = vshrl.u32 %v169, 4
  %v171 = vand.u32 %v169, 15
  %v172 = vsub.s32 0, %v171
  %v173 = vsel %vm167, %v172, %v171
  %vm174 = vcmp.lt.s32.totalorder %v116, 0
  %v175 = vsub.s32 0, %v116
  %v176 = vsel %vm174, %v175, %v116
  %v177 = vshrl.u32 %v176, 4
  %v178 = vand.u32 %v176, 15
  %v179 = vsub.s32 0, %v178
  %v180 = vsel %vm174, %v179, %v178
  %vm181 = vcmp.lt.s32.totalorder %v117, 0
  %v182 = vsub.s32 0, %v117
  %v183 = vsel %vm181, %v182, %v117
  %v184 = vshrl.u32 %v183, 4
  %v185 = vand.u32 %v183, 15
  %v186 = vsub.s32 0, %v185
  %v187 = vsel %vm181, %v186, %v185
  %vm188 = vcmp.lt.s32.totalorder %v118, 0
  %v189 = vsub.s32 0, %v118
  %v190 = vsel %vm188, %v189, %v118
  %v191 = vshrl.u32 %v190, 4
  %v192 = vand.u32 %v190, 15
  %v193 = vsub.s32 0, %v192
  %v194 = vsel %vm188, %v193, %v192
  %vm195 = vcmp.lt.s32.totalorder %v119, 0
  %v196 = vsub.s32 0, %v119
  %v197 = vsel %vm195, %v196, %v119
  %v198 = vshrl.u32 %v197, 4
  %v199 = vand.u32 %v197, 15
  %v200 = vsub.s32 0, %v199
  %v201 = vsel %vm195, %v200, %v199
  %vm202 = vcmp.lt.s32.totalorder %v120, 0
  %v203 = vsub.s32 0, %v120
  %v204 = vsel %vm202, %v203, %v120
  %v205 = vshrl.u32 %v204, 4
  %v206 = vand.u32 %v204, 15
  %v207 = vsub.s32 0, %v206
  %v208 = vsel %vm202, %v207, %v206
  %vm209 = vcmp.lt.s32.totalorder %v121, 0
  %v210 = vsub.s32 0, %v121
  %v211 = vsel %vm209, %v210, %v121
  %v212 = vshrl.u32 %v211, 4
  %v213 = vand.u32 %v211, 15
  %v214 = vsub.s32 0, %v213
  %v215 = vsel %vm209, %v214, %v213
  %vm216 = vcmp.lt.s32.totalorder %v122, 0
  %v217 = vsub.s32 0, %v122
  %v218 = vsel %vm216, %v217, %v122
  %v219 = vshrl.u32 %v218, 4
  %v220 = vand.u32 %v218, 15
  %v221 = vsub.s32 0, %v220
  %v222 = vsel %vm216, %v221, %v220
  %vm223 = vcmp.lt.s32.totalorder %v123, 0
  %v224 = vsub.s32 0, %v123
  %v225 = vsel %vm223, %v224, %v123
  %v226 = vshrl.u32 %v225, 4
  %v227 = vand.u32 %v225, 15
  %v228 = vsub.s32 0, %v227
  %v229 = vsel %vm223, %v228, %v227
  %vm230 = vcmp.lt.s32.totalorder %v124, 0
  %v231 = vsub.s32 0, %v124
  %v232 = vsel %vm230, %v231, %v124
  %v233 = vshrl.u32 %v232, 4
  %v234 = vand.u32 %v232, 15
  %v235 = vsub.s32 0, %v234
  %v236 = vsel %vm230, %v235, %v234
  %vm237 = vcmp.lt.s32.totalorder %v125, 0
  %v238 = vsub.s32 0, %v125
  %v239 = vsel %vm237, %v238, %v125
  %v240 = vshrl.u32 %v239, 4
  %v241 = vand.u32 %v239, 15
  %v242 = vsub.s32 0, %v241
  %v243 = vsel %vm237, %v242, %v241
  %vm244 = vcmp.lt.s32.totalorder %v126, 0
  %v245 = vsub.s32 0, %v126
  %v246 = vsel %vm244, %v245, %v126
  %v247 = vshrl.u32 %v246, 4
  %v248 = vand.u32 %v246, 15
  %v249 = vsub.s32 0, %v248
  %v250 = vsel %vm244, %v249, %v248
  %vm251 = vcmp.lt.s32.totalorder %v127, 0
  %v252 = vsub.s32 0, %v127
  %v253 = vsel %vm251, %v252, %v127
  %v254 = vshrl.u32 %v253, 4
  %v255 = vand.u32 %v253, 15
  %v256 = vsub.s32 0, %v255
  %v257 = vsel %vm251, %v256, %v255
  %vm258 = vcmp.lt.s32.totalorder %v128, 0
  %v259 = vsub.s32 0, %v128
  %v260 = vsel %vm258, %v259, %v128
  %v261 = vshrl.u32 %v260, 4
  %v262 = vand.u32 %v260, 15
  %v263 = vsub.s32 0, %v262
  %v264 = vsel %vm258, %v263, %v262
  %vm265 = vcmp.lt.s32.totalorder %v129, 0
  %v266 = vsub.s32 0, %v129
  %v267 = vsel %vm265, %v266, %v129
  %v268 = vshrl.u32 %v267, 4
  %v269 = vand.u32 %v267, 15
  %v270 = vsub.s32 0, %v269
  %v271 = vsel %vm265, %v270, %v269
  %vm272 = vcmp.lt.s32.totalorder %v130, 0
  %v273 = vsub.s32 0, %v130
  %v274 = vsel %vm272, %v273, %v130
  %v275 = vshrl.u32 %v274, 4
  %v276 = vand.u32 %v274, 15
  %v277 = vsub.s32 0, %v276
  %v278 = vsel %vm272, %v277, %v276
  %vm279 = vcmp.lt.s32.totalorder %v131, 0
  %v280 = vsub.s32 0, %v131
  %v281 = vsel %vm279, %v280, %v131
  %v282 = vshrl.u32 %v281, 4
  %v283 = vand.u32 %v281, 15
  %v284 = vsub.s32 0, %v283
  %v285 = vsel %vm279, %v284, %v283
  %vm286 = vcmp.lt.s32.totalorder %v132, 0
  %v287 = vsub.s32 0, %v132
  %v288 = vsel %vm286, %v287, %v132
  %v289 = vshrl.u32 %v288, 4
  %v290 = vand.u32 %v288, 15
  %v291 = vsub.s32 0, %v290
  %v292 = vsel %vm286, %v291, %v290
  %vm293 = vcmp.lt.s32.totalorder %v133, 0
  %v294 = vsub.s32 0, %v133
  %v295 = vsel %vm293, %v294, %v133
  %v296 = vshrl.u32 %v295, 4
  %v297 = vand.u32 %v295, 15
  %v298 = vsub.s32 0, %v297
  %v299 = vsel %vm293, %v298, %v297
  %vm300 = vcmp.lt.s32.totalorder %v134, 0
  %v301 = vsub.s32 0, %v134
  %v302 = vsel %vm300, %v301, %v134
  %v303 = vshrl.u32 %v302, 4
  %v304 = vand.u32 %v302, 15
  %v305 = vsub.s32 0, %v304
  %v306 = vsel %vm300, %v305, %v304
  %vm307 = vcmp.lt.s32.totalorder %v135, 0
  %v308 = vsub.s32 0, %v135
  %v309 = vsel %vm307, %v308, %v135
  %v310 = vshrl.u32 %v309, 4
  %v311 = vand.u32 %v309, 15
  %v312 = vsub.s32 0, %v311
  %v313 = vsel %vm307, %v312, %v311
  %vm314 = vcmp.lt.s32.totalorder %v136, 0
  %v315 = vsub.s32 0, %v136
  %v316 = vsel %vm314, %v315, %v136
  %v317 = vshrl.u32 %v316, 4
  %v318 = vand.u32 %v316, 15
  %v319 = vsub.s32 0, %v318
  %v320 = vsel %vm314, %v319, %v318
  %vm321 = vcmp.lt.s32.totalorder %v137, 0
  %v322 = vsub.s32 0, %v137
  %v323 = vsel %vm321, %v322, %v137
  %v324 = vshrl.u32 %v323, 4
  %v325 = vand.u32 %v323, 15
  %v326 = vsub.s32 0, %v325
  %v327 = vsel %vm321, %v326, %v325
  %vm328 = vcmp.lt.s32.totalorder %v138, 0
  %v329 = vsub.s32 0, %v138
  %v330 = vsel %vm328, %v329, %v138
  %v331 = vshrl.u32 %v330, 4
  %v332 = vand.u32 %v330, 15
  %v333 = vsub.s32 0, %v332
  %v334 = vsel %vm328, %v333, %v332
  %vm335 = vcmp.ne.s32.totalorder %v145, 0
  %vm336 = vcmp.ne.s32.totalorder %v152, 0
  %vm337 = vcmp.ne.s32.totalorder %v159, 0
  %vm338 = vcmp.ne.s32.totalorder %v166, 0
  %vm339 = vcmp.ne.s32.totalorder %v173, 0
  %vm340 = vcmp.ne.s32.totalorder %v180, 0
  %vm341 = vcmp.ne.s32.totalorder %v187, 0
  %vm342 = vcmp.ne.s32.totalorder %v194, 0
  %vm343 = vcmp.ne.s32.totalorder %v201, 0
  %vm344 = vcmp.ne.s32.totalorder %v208, 0
  %vm345 = vcmp.ne.s32.totalorder %v215, 0
  %vm346 = vcmp.ne.s32.totalorder %v222, 0
  %vm347 = vcmp.ne.s32.totalorder %v229, 0
  %vm348 = vcmp.ne.s32.totalorder %v236, 0
  %vm349 = vcmp.ne.s32.totalorder %v243, 0
  %vm350 = vcmp.ne.s32.totalorder %v250, 0
  %vm351 = vcmp.ne.s32.totalorder %v257, 0
  %vm352 = vcmp.ne.s32.totalorder %v264, 0
  %vm353 = vcmp.ne.s32.totalorder %v271, 0
  %vm354 = vcmp.ne.s32.totalorder %v278, 0
  %vm355 = vcmp.ne.s32.totalorder %v285, 0
  %vm356 = vcmp.ne.s32.totalorder %v292, 0
  %vm357 = vcmp.ne.s32.totalorder %v299, 0
  %vm358 = vcmp.ne.s32.totalorder %v306, 0
  %vm359 = vcmp.ne.s32.totalorder %v313, 0
  %vm360 = vcmp.ne.s32.totalorder %v320, 0
  %vm361 = vcmp.ne.s32.totalorder %v327, 0
  %vm362 = vcmp.ne.s32.totalorder %v334, 0
  %vm363 = vcmp.lt.s32.totalorder %v145, 0
  %vm364 = vcmp.lt.s32.totalorder %v152, 0
  %vm365 = vcmp.lt.s32.totalorder %v159, 0
  %vm366 = vcmp.lt.s32.totalorder %v166, 0
  %vm367 = vcmp.lt.s32.totalorder %v173, 0
  %vm368 = vcmp.lt.s32.totalorder %v180, 0
  %vm369 = vcmp.lt.s32.totalorder %v187, 0
  %vm370 = vcmp.lt.s32.totalorder %v194, 0
  %vm371 = vcmp.lt.s32.totalorder %v201, 0
  %vm372 = vcmp.lt.s32.totalorder %v208, 0
  %vm373 = vcmp.lt.s32.totalorder %v215, 0
  %vm374 = vcmp.lt.s32.totalorder %v222, 0
  %vm375 = vcmp.lt.s32.totalorder %v229, 0
  %vm376 = vcmp.lt.s32.totalorder %v236, 0
  %vm377 = vcmp.lt.s32.totalorder %v243, 0
  %vm378 = vcmp.lt.s32.totalorder %v250, 0
  %vm379 = vcmp.lt.s32.totalorder %v257, 0
  %vm380 = vcmp.lt.s32.totalorder %v264, 0
  %vm381 = vcmp.lt.s32.totalorder %v271, 0
  %vm382 = vcmp.lt.s32.totalorder %v278, 0
  %vm383 = vcmp.lt.s32.totalorder %v285, 0
  %vm384 = vcmp.lt.s32.totalorder %v292, 0
  %vm385 = vcmp.lt.s32.totalorder %v299, 0
  %vm386 = vcmp.lt.s32.totalorder %v306, 0
  %vm387 = vcmp.lt.s32.totalorder %v313, 0
  %vm388 = vcmp.lt.s32.totalorder %v320, 0
  %vm389 = vcmp.lt.s32.totalorder %v327, 0
  %vm390 = vcmp.lt.s32.totalorder %v334, 0
  %vm391 = vmand %vm363, %vm335
  %vm392 = vmand %vm364, %vm336
  %vm393 = vmand %vm365, %vm337
  %vm394 = vmand %vm366, %vm338
  %vm395 = vmand %vm367, %vm339
  %vm396 = vmand %vm368, %vm340
  %vm397 = vmand %vm369, %vm341
  %vm398 = vmand %vm370, %vm342
  %vm399 = vmand %vm371, %vm343
  %vm400 = vmand %vm372, %vm344
  %vm401 = vmand %vm373, %vm345
  %vm402 = vmand %vm374, %vm346
  %vm403 = vmand %vm375, %vm347
  %vm404 = vmand %vm376, %vm348
  %vm405 = vmand %vm377, %vm349
  %vm406 = vmand %vm378, %vm350
  %vm407 = vmand %vm379, %vm351
  %vm408 = vmand %vm380, %vm352
  %vm409 = vmand %vm381, %vm353
  %vm410 = vmand %vm382, %vm354
  %vm411 = vmand %vm383, %vm355
  %vm412 = vmand %vm384, %vm356
  %vm413 = vmand %vm385, %vm357
  %vm414 = vmand %vm386, %vm358
  %vm415 = vmand %vm387, %vm359
  %vm416 = vmand %vm388, %vm360
  %vm417 = vmand %vm389, %vm361
  %vm418 = vmand %vm390, %vm362
  %v419 = vadd.s32 %v145, 16
  %v420 = vadd.s32 %v152, 16
  %v421 = vadd.s32 %v159, 16
  %v422 = vadd.s32 %v166, 16
  %v423 = vadd.s32 %v173, 16
  %v424 = vadd.s32 %v180, 16
  %v425 = vadd.s32 %v187, 16
  %v426 = vadd.s32 %v194, 16
  %v427 = vadd.s32 %v201, 16
  %v428 = vadd.s32 %v208, 16
  %v429 = vadd.s32 %v215, 16
  %v430 = vadd.s32 %v222, 16
  %v431 = vadd.s32 %v229, 16
  %v432 = vadd.s32 %v236, 16
  %v433 = vadd.s32 %v243, 16
  %v434 = vadd.s32 %v250, 16
  %v435 = vadd.s32 %v257, 16
  %v436 = vadd.s32 %v264, 16
  %v437 = vadd.s32 %v271, 16
  %v438 = vadd.s32 %v278, 16
  %v439 = vadd.s32 %v285, 16
  %v440 = vadd.s32 %v292, 16
  %v441 = vadd.s32 %v299, 16
  %v442 = vadd.s32 %v306, 16
  %v443 = vadd.s32 %v313, 16
  %v444 = vadd.s32 %v320, 16
  %v445 = vadd.s32 %v327, 16
  %v446 = vadd.s32 %v334, 16
  %v447 = vsel %vm391, %v419, %v145
  %v448 = vsel %vm392, %v420, %v152
  %v449 = vsel %vm393, %v421, %v159
  %v450 = vsel %vm394, %v422, %v166
  %v451 = vsel %vm395, %v423, %v173
  %v452 = vsel %vm396, %v424, %v180
  %v453 = vsel %vm397, %v425, %v187
  %v454 = vsel %vm398, %v426, %v194
  %v455 = vsel %vm399, %v427, %v201
  %v456 = vsel %vm400, %v428, %v208
  %v457 = vsel %vm401, %v429, %v215
  %v458 = vsel %vm402, %v430, %v222
  %v459 = vsel %vm403, %v431, %v229
  %v460 = vsel %vm404, %v432, %v236
  %v461 = vsel %vm405, %v433, %v243
  %v462 = vsel %vm406, %v434, %v250
  %v463 = vsel %vm407, %v435, %v257
  %v464 = vsel %vm408, %v436, %v264
  %v465 = vsel %vm409, %v437, %v271
  %v466 = vsel %vm410, %v438, %v278
  %v467 = vsel %vm411, %v439, %v285
  %v468 = vsel %vm412, %v440, %v292
  %v469 = vsel %vm413, %v441, %v299
  %v470 = vsel %vm414, %v442, %v306
  %v471 = vsel %vm415, %v443, %v313
  %v472 = vsel %vm416, %v444, %v320
  %v473 = vsel %vm417, %v445, %v327
  %v474 = vsel %vm418, %v446, %v334
  %v475 = vlaneseq
  %v476 = vand.u32 %v475, 127
  %vm477 = vcmp.eq.s32.totalorder %v83, %v476
  %vm478 = vcmp.eq.s32.totalorder %v84, %v476
  %vm479 = vcmp.eq.s32.totalorder %v85, %v476
  %vm480 = vcmp.eq.s32.totalorder %v86, %v476
  %vm481 = vcmp.eq.s32.totalorder %v447, %v476
  %vm482 = vcmp.eq.s32.totalorder %v448, %v476
  %vm483 = vcmp.eq.s32.totalorder %v449, %v476
  %vm484 = vcmp.eq.s32.totalorder %v450, %v476
  %vm485 = vcmp.eq.s32.totalorder %v451, %v476
  %vm486 = vcmp.eq.s32.totalorder %v452, %v476
  %vm487 = vcmp.eq.s32.totalorder %v453, %v476
  %vm488 = vcmp.eq.s32.totalorder %v454, %v476
  %vm489 = vcmp.eq.s32.totalorder %v455, %v476
  %vm490 = vcmp.eq.s32.totalorder %v456, %v476
  %vm491 = vcmp.eq.s32.totalorder %v457, %v476
  %vm492 = vcmp.eq.s32.totalorder %v458, %v476
  %vm493 = vcmp.eq.s32.totalorder %v459, %v476
  %vm494 = vcmp.eq.s32.totalorder %v460, %v476
  %vm495 = vcmp.eq.s32.totalorder %v461, %v476
  %vm496 = vcmp.eq.s32.totalorder %v462, %v476
  %vm497 = vcmp.eq.s32.totalorder %v463, %v476
  %vm498 = vcmp.eq.s32.totalorder %v464, %v476
  %vm499 = vcmp.eq.s32.totalorder %v465, %v476
  %vm500 = vcmp.eq.s32.totalorder %v466, %v476
  %vm501 = vcmp.eq.s32.totalorder %v467, %v476
  %vm502 = vcmp.eq.s32.totalorder %v468, %v476
  %vm503 = vcmp.eq.s32.totalorder %v469, %v476
  %vm504 = vcmp.eq.s32.totalorder %v470, %v476
  %vm505 = vcmp.eq.s32.totalorder %v471, %v476
  %vm506 = vcmp.eq.s32.totalorder %v472, %v476
  %vm507 = vcmp.eq.s32.totalorder %v473, %v476
  %vm508 = vcmp.eq.s32.totalorder %v474, %v476
  %v509 = vsel %vm477, 1, 0
  %v510 = vsel %vm478, 1, 0
  %v511 = vsel %vm479, 1, 0
  %v512 = vsel %vm480, 1, 0
  %v513 = vsel %vm481, 1, 0
  %v514 = vsel %vm482, 1, 0
  %v515 = vsel %vm483, 1, 0
  %v516 = vsel %vm484, 1, 0
  %v517 = vsel %vm485, 1, 0
  %v518 = vsel %vm486, 1, 0
  %v519 = vsel %vm487, 1, 0
  %v520 = vsel %vm488, 1, 0
  %v521 = vsel %vm489, 1, 0
  %v522 = vsel %vm490, 1, 0
  %v523 = vsel %vm491, 1, 0
  %v524 = vsel %vm492, 1, 0
  %v525 = vsel %vm493, 1, 0
  %v526 = vsel %vm494, 1, 0
  %v527 = vsel %vm495, 1, 0
  %v528 = vsel %vm496, 1, 0
  %v529 = vsel %vm497, 1, 0
  %v530 = vsel %vm498, 1, 0
  %v531 = vsel %vm499, 1, 0
  %v532 = vsel %vm500, 1, 0
  %v533 = vsel %vm501, 1, 0
  %v534 = vsel %vm502, 1, 0
  %v535 = vsel %vm503, 1, 0
  %v536 = vsel %vm504, 1, 0
  %v537 = vsel %vm505, 1, 0
  %v538 = vsel %vm506, 1, 0
  %v539 = vsel %vm507, 1, 0
  %v540 = vsel %vm508, 1, 0
  %v541 = vcvt.s32.f32 %v509
  %v542 = vcvt.s32.f32 %v510
  %v543 = vcvt.s32.f32 %v511
  %v544 = vcvt.s32.f32 %v512
  %v545 = vcvt.s32.f32 %v513
  %v546 = vcvt.s32.f32 %v514
  %v547 = vcvt.s32.f32 %v515
  %v548 = vcvt.s32.f32 %v516
  %v549 = vcvt.s32.f32 %v517
  %v550 = vcvt.s32.f32 %v518
  %v551 = vcvt.s32.f32 %v519
  %v552 = vcvt.s32.f32 %v520
  %v553 = vcvt.s32.f32 %v521
  %v554 = vcvt.s32.f32 %v522
  %v555 = vcvt.s32.f32 %v523
  %v556 = vcvt.s32.f32 %v524
  %v557 = vcvt.s32.f32 %v525
  %v558 = vcvt.s32.f32 %v526
  %v559 = vcvt.s32.f32 %v527
  %v560 = vcvt.s32.f32 %v528
  %v561 = vcvt.s32.f32 %v529
  %v562 = vcvt.s32.f32 %v530
  %v563 = vcvt.s32.f32 %v531
  %v564 = vcvt.s32.f32 %v532
  %v565 = vcvt.s32.f32 %v533
  %v566 = vcvt.s32.f32 %v534
  %v567 = vcvt.s32.f32 %v535
  %v568 = vcvt.s32.f32 %v536
  %v569 = vcvt.s32.f32 %v537
  %v570 = vcvt.s32.f32 %v538
  %v571 = vcvt.s32.f32 %v539
  %v572 = vcvt.s32.f32 %v540
  %v573 = vadd.s32 %v476, 128
  %vm574 = vcmp.lt.s32.totalorder %v476, 0
  %v575 = vsub.s32 0, %v476
  %v576 = vsel %vm574, %v575, %v476
  %v577 = vshrl.u32 %v576, 4
  %v578 = vand.u32 %v576, 15
  %v579 = vsub.s32 0, %v578
  %v580 = vsel %vm574, %v579, %v578
  %vm581 = vcmp.lt.s32.totalorder %v573, 0
  %v582 = vsub.s32 0, %v573
  %v583 = vsel %vm581, %v582, %v573
  %v584 = vshrl.u32 %v583, 4
  %v585 = vand.u32 %v583, 15
  %v586 = vsub.s32 0, %v585
  %v587 = vsel %vm581, %v586, %v585
  %vm588 = vcmp.ne.s32.totalorder %v580, 0
  %vm589 = vcmp.ne.s32.totalorder %v587, 0
  %vm590 = vcmp.lt.s32.totalorder %v580, 0
  %vm591 = vcmp.lt.s32.totalorder %v587, 0
  %vm592 = vmand %vm590, %vm588
  %vm593 = vmand %vm591, %vm589
  %v594 = vadd.s32 %v580, 16
  %v595 = vadd.s32 %v587, 16
  %v596 = vsel %vm592, %v594, %v580
  %v597 = vsel %vm593, %v595, %v587
  %vm598 = vcmp.eq.s32.totalorder %v596, %v35
  %vm599 = vcmp.eq.s32.totalorder %v597, %v35
  %vm600 = vcmp.eq.s32.totalorder %v596, %v36
  %vm601 = vcmp.eq.s32.totalorder %v597, %v36
  %v602 = vsel %vm598, 1, 0
  %v603 = vsel %vm599, 1, 0
  %v604 = vsel %vm600, 1, 0
  %v605 = vsel %vm601, 1, 0
  %v606 = vcvt.s32.f32 %v602
  %v607 = vcvt.s32.f32 %v603
  %v608 = vcvt.s32.f32 %v604
  %v609 = vcvt.s32.f32 %v605
  %v610 = vrot.slane %v26, 7
  %v611 = vrot.slane %v27, 7
  %v612 = vrot.slane %v28, 7
  %v613 = vrot.slane %v29, 7
  %v614 = vrot.slane %v30, 7
  %v615 = vrot.slane %v31, 7
  %v616 = vrot.slane %v32, 7
  %v617 = vrot.slane %v33, 7
  %vm618 = vcmp.lt.s32.totalorder %v35, 1
  %v619 = vsel %vm618, %v614, %v616
  %v620 = vsel %vm618, %v615, %v617
  %v621 = vsel %vm618, %v612, %v614
  %v622 = vsel %vm618, %v613, %v615
  %v623 = vsel %vm618, %v610, %v612
  %v624 = vsel %vm618, %v611, %v613
  %v625 = vsel %vm618, %v616, %v610
  %v626 = vsel %vm618, %v617, %v611
  %v627 = vmul.f32 %v625, %v95
  %v628 = vmul.f32 %v626, %v95
  %v629 = vmul.f32 %v623, %v96
  %v630 = vmul.f32 %v624, %v96
  %v631 = vmul.f32 %v621, %v97
  %v632 = vmul.f32 %v622, %v97
  %v633 = vmul.f32 %v619, %v98
  %v634 = vmul.f32 %v620, %v98
  %v635 = vrot.slane %v26, 1
  %v636 = vrot.slane %v27, 1
  %v637 = vrot.slane %v28, 1
  %v638 = vrot.slane %v29, 1
  %v639 = vrot.slane %v30, 1
  %v640 = vrot.slane %v31, 1
  %v641 = vrot.slane %v32, 1
  %v642 = vrot.slane %v33, 1
  %vm643 = vcmp.lt.s32.totalorder %v35, 7
  %v644 = vsel %vm643, %v639, %v641
  %v645 = vsel %vm643, %v640, %v642
  %v646 = vsel %vm643, %v637, %v639
  %v647 = vsel %vm643, %v638, %v640
  %v648 = vsel %vm643, %v635, %v637
  %v649 = vsel %vm643, %v636, %v638
  %v650 = vsel %vm643, %v641, %v635
  %v651 = vsel %vm643, %v642, %v636
  %v652 = vmul.f32 %v648, %v107
  %v653 = vmul.f32 %v649, %v107
  %v654 = vmul.f32 %v646, %v108
  %v655 = vmul.f32 %v647, %v108
  %v656 = vmul.f32 %v644, %v109
  %v657 = vmul.f32 %v645, %v109
  %v658 = vmul.f32 %v650, %v110
  %v659 = vmul.f32 %v651, %v110
  %v660 = vpack.c.bf16 %v629, %v627
  %v661 = vpack.c.bf16 %v630, %v628
  %v662 = vpack.c.bf16 %v28, %v26
  %v663 = vpack.c.bf16 %v29, %v27
  %v664 = vpack.c.bf16 %v654, %v652
  %v665 = vpack.c.bf16 %v655, %v653
  %v666 = vpack.c.bf16 %v633, %v631
  %v667 = vpack.c.bf16 %v634, %v632
  %v668 = vpack.c.bf16 %v32, %v30
  %v669 = vpack.c.bf16 %v33, %v31
  %v670 = vpack.c.bf16 %v658, %v656
  %v671 = vpack.c.bf16 %v659, %v657
  %v672 = vld [vmem:[%s1] sm:$0xff]
  %v673 = vld [vmem:[%s1 + $0x8] sm:$0xff]
  %v674 = vld [vmem:[%s1 + $0x10] sm:$0xff]
  %v675 = vld [vmem:[%s1 + $0x18] sm:$0xff]
  %v676 = vld [vmem:[%s1 + $0x20] sm:$0xff]
  %v677 = vld [vmem:[%s1 + $0x28] sm:$0xff]
  %v678 = vld [vmem:[%s1 + $0x30] sm:$0xff]
  %v679 = vld [vmem:[%s1 + $0x38] sm:$0xff]
  %v680 = vld [vmem:[%s1 + $0x40] sm:$0xff]
  %v681 = vld [vmem:[%s1 + $0x48] sm:$0xff]
  %v682 = vld [vmem:[%s1 + $0x50] sm:$0xff]
  %v683 = vld [vmem:[%s1 + $0x58] sm:$0xff]
  %v684 = vld [vmem:[%s1 + $0x60] sm:$0xff]
  %v685 = vld [vmem:[%s1 + $0x68] sm:$0xff]
  %v686 = vld [vmem:[%s1 + $0x70] sm:$0xff]
  %v687 = vld [vmem:[%s1 + $0x78] sm:$0xff]
  %v688 = vld [vmem:[%s1 + $0x80] sm:$0xff]
  %v689 = vld [vmem:[%s1 + $0x88] sm:$0xff]
  %v690 = vld [vmem:[%s1 + $0x90] sm:$0xff]
  %v691 = vld [vmem:[%s1 + $0x98] sm:$0xff]
  %v692 = vld [vmem:[%s1 + $0xa0] sm:$0xff]
  %v693 = vld [vmem:[%s1 + $0xa8] sm:$0xff]
  %v694 = vld [vmem:[%s1 + $0xb0] sm:$0xff]
  %v695 = vld [vmem:[%s1 + $0xb8] sm:$0xff]
  %v696 = vld [vmem:[%s1 + $0xc0] sm:$0xff]
  %v697 = vld [vmem:[%s1 + $0xc8] sm:$0xff]
  %v698 = vld [vmem:[%s1 + $0xd0] sm:$0xff]
  %v699 = vld [vmem:[%s1 + $0xd8] sm:$0xff]
  %v700 = vld [vmem:[%s1 + $0xe0] sm:$0xff]
  %v701 = vld [vmem:[%s1 + $0xe8] sm:$0xff]
  %v702 = vld [vmem:[%s1 + $0xf0] sm:$0xff]
  %v703 = vld [vmem:[%s1 + $0xf8] sm:$0xff]
  %v704 = vld [vmem:[%s1 + $0x100] sm:$0xff]
  %v705 = vld [vmem:[%s1 + $0x108] sm:$0xff]
  %v706 = vld [vmem:[%s1 + $0x110] sm:$0xff]
  %v707 = vld [vmem:[%s1 + $0x118] sm:$0xff]
  %v708 = vld [vmem:[%s1 + $0x120] sm:$0xff]
  %v709 = vld [vmem:[%s1 + $0x128] sm:$0xff]
  %v710 = vld [vmem:[%s1 + $0x130] sm:$0xff]
  %v711 = vld [vmem:[%s1 + $0x138] sm:$0xff]
  %v712 = vld [vmem:[%s1 + $0x140] sm:$0xff]
  %v713 = vld [vmem:[%s1 + $0x148] sm:$0xff]
  %v714 = vld [vmem:[%s1 + $0x150] sm:$0xff]
  %v715 = vld [vmem:[%s1 + $0x158] sm:$0xff]
  %v716 = vld [vmem:[%s1 + $0x160] sm:$0xff]
  %v717 = vld [vmem:[%s1 + $0x168] sm:$0xff]
  %v718 = vld [vmem:[%s1 + $0x170] sm:$0xff]
  %v719 = vld [vmem:[%s1 + $0x178] sm:$0xff]
  %v720 = vld [vmem:[%s1 + $0x180] sm:$0xff]
  %v721 = vld [vmem:[%s1 + $0x188] sm:$0xff]
  %v722 = vld [vmem:[%s1 + $0x190] sm:$0xff]
  %v723 = vld [vmem:[%s1 + $0x198] sm:$0xff]
  %v724 = vld [vmem:[%s1 + $0x1a0] sm:$0xff]
  %v725 = vld [vmem:[%s1 + $0x1a8] sm:$0xff]
  %v726 = vld [vmem:[%s1 + $0x1b0] sm:$0xff]
  %v727 = vld [vmem:[%s1 + $0x1b8] sm:$0xff]
  %v728 = vld [vmem:[%s1 + $0x1c0] sm:$0xff]
  %v729 = vld [vmem:[%s1 + $0x1c8] sm:$0xff]
  %v730 = vld [vmem:[%s1 + $0x1d0] sm:$0xff]
  %v731 = vld [vmem:[%s1 + $0x1d8] sm:$0xff]
  %v732 = vld [vmem:[%s1 + $0x1e0] sm:$0xff]
  %v733 = vld [vmem:[%s1 + $0x1e8] sm:$0xff]
  %v734 = vld [vmem:[%s1 + $0x1f0] sm:$0xff]
  %v735 = vld [vmem:[%s1 + $0x1f8] sm:$0xff]
  %v736 = vld [vmem:[%s1 + $0x200] sm:$0xff]
  %v737 = vld [vmem:[%s1 + $0x208] sm:$0xff]
  %v738 = vld [vmem:[%s1 + $0x210] sm:$0xff]
  %v739 = vld [vmem:[%s1 + $0x218] sm:$0xff]
  %v740 = vld [vmem:[%s1 + $0x220] sm:$0xff]
  %v741 = vld [vmem:[%s1 + $0x228] sm:$0xff]
  %v742 = vld [vmem:[%s1 + $0x230] sm:$0xff]
  %v743 = vld [vmem:[%s1 + $0x238] sm:$0xff]
  %v744 = vld [vmem:[%s1 + $0x240] sm:$0xff]
  %v745 = vld [vmem:[%s1 + $0x248] sm:$0xff]
  %v746 = vld [vmem:[%s1 + $0x250] sm:$0xff]
  %v747 = vld [vmem:[%s1 + $0x258] sm:$0xff]
  %v748 = vld [vmem:[%s1 + $0x260] sm:$0xff]
  %v749 = vld [vmem:[%s1 + $0x268] sm:$0xff]
  %v750 = vld [vmem:[%s1 + $0x270] sm:$0xff]
  %v751 = vld [vmem:[%s1 + $0x278] sm:$0xff]
  %v752 = vld [vmem:[%s1 + $0x280] sm:$0xff]
  %v753 = vld [vmem:[%s1 + $0x288] sm:$0xff]
  %v754 = vld [vmem:[%s1 + $0x290] sm:$0xff]
  %v755 = vld [vmem:[%s1 + $0x298] sm:$0xff]
  %v756 = vld [vmem:[%s1 + $0x2a0] sm:$0xff]
  %v757 = vld [vmem:[%s1 + $0x2a8] sm:$0xff]
  %v758 = vld [vmem:[%s1 + $0x2b0] sm:$0xff]
  %v759 = vld [vmem:[%s1 + $0x2b8] sm:$0xff]
  %v760 = vld [vmem:[%s1 + $0x2c0] sm:$0xff]
  %v761 = vld [vmem:[%s1 + $0x2c8] sm:$0xff]
  %v762 = vld [vmem:[%s1 + $0x2d0] sm:$0xff]
  %v763 = vld [vmem:[%s1 + $0x2d8] sm:$0xff]
  %v764 = vld [vmem:[%s1 + $0x2e0] sm:$0xff]
  %v765 = vld [vmem:[%s1 + $0x2e8] sm:$0xff]
  %v766 = vld [vmem:[%s1 + $0x2f0] sm:$0xff]
  %v767 = vld [vmem:[%s1 + $0x2f8] sm:$0xff]
  %v864 = vunpack.c.l.b16 %v672
  %v865 = vunpack.c.h.b16 %v672
  %v866 = vunpack.c.l.b16 %v673
  %v867 = vunpack.c.h.b16 %v673
  %v868 = vunpack.c.l.b16 %v674
  %v869 = vunpack.c.h.b16 %v674
  %v870 = vunpack.c.l.b16 %v675
  %v871 = vunpack.c.h.b16 %v675
  %v872 = vunpack.c.l.b16 %v676
  %v873 = vunpack.c.h.b16 %v676
  %v874 = vunpack.c.l.b16 %v677
  %v875 = vunpack.c.h.b16 %v677
  %v876 = vunpack.c.l.b16 %v678
  %v877 = vunpack.c.h.b16 %v678
  %v878 = vunpack.c.l.b16 %v679
  %v879 = vunpack.c.h.b16 %v679
  %v880 = vunpack.c.l.b16 %v680
  %v881 = vunpack.c.h.b16 %v680
  %v882 = vunpack.c.l.b16 %v681
  %v883 = vunpack.c.h.b16 %v681
  %v884 = vunpack.c.l.b16 %v682
  %v885 = vunpack.c.h.b16 %v682
  %v886 = vunpack.c.l.b16 %v683
  %v887 = vunpack.c.h.b16 %v683
  %v888 = vunpack.c.l.b16 %v684
  %v889 = vunpack.c.h.b16 %v684
  %v890 = vunpack.c.l.b16 %v685
  %v891 = vunpack.c.h.b16 %v685
  %v892 = vunpack.c.l.b16 %v686
  %v893 = vunpack.c.h.b16 %v686
  %v894 = vunpack.c.l.b16 %v687
  %v895 = vunpack.c.h.b16 %v687
  %v896 = vunpack.c.l.b16 %v688
  %v897 = vunpack.c.h.b16 %v688
  %v898 = vunpack.c.l.b16 %v689
  %v899 = vunpack.c.h.b16 %v689
  %v900 = vunpack.c.l.b16 %v690
  %v901 = vunpack.c.h.b16 %v690
  %v902 = vunpack.c.l.b16 %v691
  %v903 = vunpack.c.h.b16 %v691
  %v904 = vunpack.c.l.b16 %v692
  %v905 = vunpack.c.h.b16 %v692
  %v906 = vunpack.c.l.b16 %v693
  %v907 = vunpack.c.h.b16 %v693
  %v908 = vunpack.c.l.b16 %v694
  %v909 = vunpack.c.h.b16 %v694
  %v910 = vunpack.c.l.b16 %v695
  %v911 = vunpack.c.h.b16 %v695
  %v912 = vunpack.c.l.b16 %v696
  %v913 = vunpack.c.h.b16 %v696
  %v914 = vunpack.c.l.b16 %v697
  %v915 = vunpack.c.h.b16 %v697
  %v916 = vunpack.c.l.b16 %v698
  %v917 = vunpack.c.h.b16 %v698
  %v918 = vunpack.c.l.b16 %v699
  %v919 = vunpack.c.h.b16 %v699
  %v920 = vunpack.c.l.b16 %v700
  %v921 = vunpack.c.h.b16 %v700
  %v922 = vunpack.c.l.b16 %v701
  %v923 = vunpack.c.h.b16 %v701
  %v924 = vunpack.c.l.b16 %v702
  %v925 = vunpack.c.h.b16 %v702
  %v926 = vunpack.c.l.b16 %v703
  %v927 = vunpack.c.h.b16 %v703
  %v928 = vunpack.c.l.b16 %v704
  %v929 = vunpack.c.h.b16 %v704
  %v930 = vunpack.c.l.b16 %v705
  %v931 = vunpack.c.h.b16 %v705
  %v932 = vunpack.c.l.b16 %v706
  %v933 = vunpack.c.h.b16 %v706
  %v934 = vunpack.c.l.b16 %v707
  %v935 = vunpack.c.h.b16 %v707
  %v936 = vunpack.c.l.b16 %v708
  %v937 = vunpack.c.h.b16 %v708
  %v938 = vunpack.c.l.b16 %v709
  %v939 = vunpack.c.h.b16 %v709
  %v940 = vunpack.c.l.b16 %v710
  %v941 = vunpack.c.h.b16 %v710
  %v942 = vunpack.c.l.b16 %v711
  %v943 = vunpack.c.h.b16 %v711
  %v944 = vunpack.c.l.b16 %v712
  %v945 = vunpack.c.h.b16 %v712
  %v946 = vunpack.c.l.b16 %v713
  %v947 = vunpack.c.h.b16 %v713
  %v948 = vunpack.c.l.b16 %v714
  %v949 = vunpack.c.h.b16 %v714
  %v950 = vunpack.c.l.b16 %v715
  %v951 = vunpack.c.h.b16 %v715
  %v952 = vunpack.c.l.b16 %v716
  %v953 = vunpack.c.h.b16 %v716
  %v954 = vunpack.c.l.b16 %v717
  %v955 = vunpack.c.h.b16 %v717
  %v956 = vunpack.c.l.b16 %v718
  %v957 = vunpack.c.h.b16 %v718
  %v958 = vunpack.c.l.b16 %v719
  %v959 = vunpack.c.h.b16 %v719
  %v960 = vunpack.c.l.b16 %v720
  %v961 = vunpack.c.h.b16 %v720
  %v962 = vunpack.c.l.b16 %v721
  %v963 = vunpack.c.h.b16 %v721
  %v964 = vunpack.c.l.b16 %v722
  %v965 = vunpack.c.h.b16 %v722
  %v966 = vunpack.c.l.b16 %v723
  %v967 = vunpack.c.h.b16 %v723
  %v968 = vunpack.c.l.b16 %v724
  %v969 = vunpack.c.h.b16 %v724
  %v970 = vunpack.c.l.b16 %v725
  %v971 = vunpack.c.h.b16 %v725
  %v972 = vunpack.c.l.b16 %v726
  %v973 = vunpack.c.h.b16 %v726
  %v974 = vunpack.c.l.b16 %v727
  %v975 = vunpack.c.h.b16 %v727
  %v976 = vunpack.c.l.b16 %v728
  %v977 = vunpack.c.h.b16 %v728
  %v978 = vunpack.c.l.b16 %v729
  %v979 = vunpack.c.h.b16 %v729
  %v980 = vunpack.c.l.b16 %v730
  %v981 = vunpack.c.h.b16 %v730
  %v982 = vunpack.c.l.b16 %v731
  %v983 = vunpack.c.h.b16 %v731
  %v984 = vunpack.c.l.b16 %v732
  %v985 = vunpack.c.h.b16 %v732
  %v986 = vunpack.c.l.b16 %v733
  %v987 = vunpack.c.h.b16 %v733
  %v988 = vunpack.c.l.b16 %v734
  %v989 = vunpack.c.h.b16 %v734
  %v990 = vunpack.c.l.b16 %v735
  %v991 = vunpack.c.h.b16 %v735
  %v992 = vunpack.c.l.b16 %v736
  %v993 = vunpack.c.h.b16 %v736
  %v994 = vunpack.c.l.b16 %v737
  %v995 = vunpack.c.h.b16 %v737
  %v996 = vunpack.c.l.b16 %v738
  %v997 = vunpack.c.h.b16 %v738
  %v998 = vunpack.c.l.b16 %v739
  %v999 = vunpack.c.h.b16 %v739
  %v1000 = vunpack.c.l.b16 %v740
  %v1001 = vunpack.c.h.b16 %v740
  %v1002 = vunpack.c.l.b16 %v741
  %v1003 = vunpack.c.h.b16 %v741
  %v1004 = vunpack.c.l.b16 %v742
  %v1005 = vunpack.c.h.b16 %v742
  %v1006 = vunpack.c.l.b16 %v743
  %v1007 = vunpack.c.h.b16 %v743
  %v1008 = vunpack.c.l.b16 %v744
  %v1009 = vunpack.c.h.b16 %v744
  %v1010 = vunpack.c.l.b16 %v745
  %v1011 = vunpack.c.h.b16 %v745
  %v1012 = vunpack.c.l.b16 %v746
  %v1013 = vunpack.c.h.b16 %v746
  %v1014 = vunpack.c.l.b16 %v747
  %v1015 = vunpack.c.h.b16 %v747
  %v1016 = vunpack.c.l.b16 %v748
  %v1017 = vunpack.c.h.b16 %v748
  %v1018 = vunpack.c.l.b16 %v749
  %v1019 = vunpack.c.h.b16 %v749
  %v1020 = vunpack.c.l.b16 %v750
  %v1021 = vunpack.c.h.b16 %v750
  %v1022 = vunpack.c.l.b16 %v751
  %v1023 = vunpack.c.h.b16 %v751
  %v1024 = vunpack.c.l.b16 %v752
  %v1025 = vunpack.c.h.b16 %v752
  %v1026 = vunpack.c.l.b16 %v753
  %v1027 = vunpack.c.h.b16 %v753
  %v1028 = vunpack.c.l.b16 %v754
  %v1029 = vunpack.c.h.b16 %v754
  %v1030 = vunpack.c.l.b16 %v755
  %v1031 = vunpack.c.h.b16 %v755
  %v1032 = vunpack.c.l.b16 %v756
  %v1033 = vunpack.c.h.b16 %v756
  %v1034 = vunpack.c.l.b16 %v757
  %v1035 = vunpack.c.h.b16 %v757
  %v1036 = vunpack.c.l.b16 %v758
  %v1037 = vunpack.c.h.b16 %v758
  %v1038 = vunpack.c.l.b16 %v759
  %v1039 = vunpack.c.h.b16 %v759
  %v1040 = vunpack.c.l.b16 %v760
  %v1041 = vunpack.c.h.b16 %v760
  %v1042 = vunpack.c.l.b16 %v761
  %v1043 = vunpack.c.h.b16 %v761
  %v1044 = vunpack.c.l.b16 %v762
  %v1045 = vunpack.c.h.b16 %v762
  %v1046 = vunpack.c.l.b16 %v763
  %v1047 = vunpack.c.h.b16 %v763
  %v1048 = vunpack.c.l.b16 %v764
  %v1049 = vunpack.c.h.b16 %v764
  %v1050 = vunpack.c.l.b16 %v765
  %v1051 = vunpack.c.h.b16 %v765
  %v1052 = vunpack.c.l.b16 %v766
  %v1053 = vunpack.c.h.b16 %v766
  %v1054 = vunpack.c.l.b16 %v767
  %v1055 = vunpack.c.h.b16 %v767
  %v1056 = vpack.c.b16 %v866, %v864
  %v1057 = vpack.c.b16 %v867, %v865
  %v1058 = vpack.c.b16 %v870, %v868
  %v1059 = vpack.c.b16 %v871, %v869
  %v1060 = vpack.c.b16 %v874, %v872
  %v1061 = vpack.c.b16 %v875, %v873
  %v1062 = vpack.c.b16 %v878, %v876
  %v1063 = vpack.c.b16 %v879, %v877
  %v1064 = vpack.c.b16 %v882, %v880
  %v1065 = vpack.c.b16 %v883, %v881
  %v1066 = vpack.c.b16 %v886, %v884
  %v1067 = vpack.c.b16 %v887, %v885
  %v1068 = vpack.c.b16 %v890, %v888
  %v1069 = vpack.c.b16 %v891, %v889
  %v1070 = vpack.c.b16 %v894, %v892
  %v1071 = vpack.c.b16 %v895, %v893
  %v1072 = vpack.c.b16 %v898, %v896
  %v1073 = vpack.c.b16 %v899, %v897
  %v1074 = vpack.c.b16 %v902, %v900
  %v1075 = vpack.c.b16 %v903, %v901
  %v1076 = vpack.c.b16 %v906, %v904
  %v1077 = vpack.c.b16 %v907, %v905
  %v1078 = vpack.c.b16 %v910, %v908
  %v1079 = vpack.c.b16 %v911, %v909
  %v1080 = vpack.c.b16 %v914, %v912
  %v1081 = vpack.c.b16 %v915, %v913
  %v1082 = vpack.c.b16 %v918, %v916
  %v1083 = vpack.c.b16 %v919, %v917
  %v1084 = vpack.c.b16 %v922, %v920
  %v1085 = vpack.c.b16 %v923, %v921
  %v1086 = vpack.c.b16 %v926, %v924
  %v1087 = vpack.c.b16 %v927, %v925
  %v1088 = vpack.c.b16 %v930, %v928
  %v1089 = vpack.c.b16 %v931, %v929
  %v1090 = vpack.c.b16 %v934, %v932
  %v1091 = vpack.c.b16 %v935, %v933
  %v1092 = vpack.c.b16 %v938, %v936
  %v1093 = vpack.c.b16 %v939, %v937
  %v1094 = vpack.c.b16 %v942, %v940
  %v1095 = vpack.c.b16 %v943, %v941
  %v1096 = vpack.c.b16 %v946, %v944
  %v1097 = vpack.c.b16 %v947, %v945
  %v1098 = vpack.c.b16 %v950, %v948
  %v1099 = vpack.c.b16 %v951, %v949
  %v1100 = vpack.c.b16 %v954, %v952
  %v1101 = vpack.c.b16 %v955, %v953
  %v1102 = vpack.c.b16 %v958, %v956
  %v1103 = vpack.c.b16 %v959, %v957
  %v1104 = vpack.c.b16 %v962, %v960
  %v1105 = vpack.c.b16 %v963, %v961
  %v1106 = vpack.c.b16 %v966, %v964
  %v1107 = vpack.c.b16 %v967, %v965
  %v1108 = vpack.c.b16 %v970, %v968
  %v1109 = vpack.c.b16 %v971, %v969
  %v1110 = vpack.c.b16 %v974, %v972
  %v1111 = vpack.c.b16 %v975, %v973
  %v1112 = vpack.c.b16 %v978, %v976
  %v1113 = vpack.c.b16 %v979, %v977
  %v1114 = vpack.c.b16 %v982, %v980
  %v1115 = vpack.c.b16 %v983, %v981
  %v1116 = vpack.c.b16 %v986, %v984
  %v1117 = vpack.c.b16 %v987, %v985
  %v1118 = vpack.c.b16 %v990, %v988
  %v1119 = vpack.c.b16 %v991, %v989
  %v1120 = vpack.c.b16 %v994, %v992
  %v1121 = vpack.c.b16 %v995, %v993
  %v1122 = vpack.c.b16 %v998, %v996
  %v1123 = vpack.c.b16 %v999, %v997
  %v1124 = vpack.c.b16 %v1002, %v1000
  %v1125 = vpack.c.b16 %v1003, %v1001
  %v1126 = vpack.c.b16 %v1006, %v1004
  %v1127 = vpack.c.b16 %v1007, %v1005
  %v1128 = vpack.c.b16 %v1010, %v1008
  %v1129 = vpack.c.b16 %v1011, %v1009
  %v1130 = vpack.c.b16 %v1014, %v1012
  %v1131 = vpack.c.b16 %v1015, %v1013
  %v1132 = vpack.c.b16 %v1018, %v1016
  %v1133 = vpack.c.b16 %v1019, %v1017
  %v1134 = vpack.c.b16 %v1022, %v1020
  %v1135 = vpack.c.b16 %v1023, %v1021
  %v1136 = vpack.c.b16 %v1026, %v1024
  %v1137 = vpack.c.b16 %v1027, %v1025
  %v1138 = vpack.c.b16 %v1030, %v1028
  %v1139 = vpack.c.b16 %v1031, %v1029
  %v1140 = vpack.c.b16 %v1034, %v1032
  %v1141 = vpack.c.b16 %v1035, %v1033
  %v1142 = vpack.c.b16 %v1038, %v1036
  %v1143 = vpack.c.b16 %v1039, %v1037
  %v1144 = vpack.c.b16 %v1042, %v1040
  %v1145 = vpack.c.b16 %v1043, %v1041
  %v1146 = vpack.c.b16 %v1046, %v1044
  %v1147 = vpack.c.b16 %v1047, %v1045
  %v1148 = vpack.c.b16 %v1050, %v1048
  %v1149 = vpack.c.b16 %v1051, %v1049
  %v1150 = vpack.c.b16 %v1054, %v1052
  %v1151 = vpack.c.b16 %v1055, %v1053
  %1248 = vmatprep.subr.bf16.mxu0 %v1057
  %1249 = vmatpush1.bf16.msra.mxu0 %v1056
  %1250 = vmatprep.subr.bf16.mxu0 %v1059
  %1251 = vmatpush1.bf16.msra.mxu0 %v1058
  %1252 = vmatprep.subr.bf16.mxu0 %v1061
  %1253 = vmatpush1.bf16.msra.mxu0 %v1060
  %1254 = vmatprep.subr.bf16.mxu0 %v1063
  %1255 = vmatpush1.bf16.msra.mxu0 %v1062
  %1256 = vmatprep.subr.bf16.mxu0 %v1065
  %1257 = vmatpush1.bf16.msra.mxu0 %v1064
  %1258 = vmatprep.subr.bf16.mxu0 %v1067
  %1259 = vmatpush1.bf16.msra.mxu0 %v1066
  %1260 = vmatprep.subr.bf16.mxu0 %v1069
  %1261 = vmatpush1.bf16.msra.mxu0 %v1068
  %1262 = vmatprep.subr.bf16.mxu0 %v1071
  %1263 = vmatpush1.bf16.msra.mxu0 %v1070
  %1264 = vmatprep.subr.bf16.mxu0 %v1073
  %1265 = vmatpush1.bf16.msra.mxu0 %v1072
  %1266 = vmatprep.subr.bf16.mxu0 %v1075
  %1267 = vmatpush1.bf16.msra.mxu0 %v1074
  %1268 = vmatprep.subr.bf16.mxu0 %v1077
  %1269 = vmatpush1.bf16.msra.mxu0 %v1076
  %1270 = vmatprep.subr.bf16.mxu0 %v1079
  %1271 = vmatpush1.bf16.msra.mxu0 %v1078
  %1272 = vmatprep.subr.bf16.mxu0 %v1081
  %1273 = vmatpush1.bf16.msra.mxu0 %v1080
  %1274 = vmatprep.subr.bf16.mxu0 %v1083
  %1275 = vmatpush1.bf16.msra.mxu0 %v1082
  %1276 = vmatprep.subr.bf16.mxu0 %v1085
  %1277 = vmatpush1.bf16.msra.mxu0 %v1084
  %1278 = vmatprep.subr.bf16.mxu0 %v1087
  %1279 = vmatpush1.bf16.msra.mxu0 %v1086
  %1280 = vmatprep.mubr.bf16.mxu0 %v661
  %1281 = vmatmul.mubr.bf16.gmra.mrb[0].mxu0 %v660
  %v1282 = vpop.f32.mrb[0].mxu0
  %v1283 = vadd.f32 0.0, %v1282
  %v1284 = vpop.f32.mrb[0].mxu0
  %v1285 = vadd.f32 0.0, %v1284
  %v1286 = vpop.f32.mrb[0].mxu0
  %v1287 = vadd.f32 0.0, %v1286
  %v1288 = vpop.f32.mrb[0].mxu0
  %v1289 = vadd.f32 0.0, %v1288
  %1290 = vmatprep.mubr.bf16.mxu0 %v667
  %1291 = vmatmul.mubr.bf16.gmra.mrb[0].mxu0 %v666
  %v1292 = vpop.f32.mrb[0].mxu0
  %v1293 = vadd.f32 0.0, %v1292
  %v1294 = vpop.f32.mrb[0].mxu0
  %v1295 = vadd.f32 0.0, %v1294
  %v1296 = vpop.f32.mrb[0].mxu0
  %v1297 = vadd.f32 0.0, %v1296
  %v1298 = vpop.f32.mrb[0].mxu0
  %v1299 = vadd.f32 0.0, %v1298
  %1300 = vdwg.mxu0
  %1301 = vmatprep.subr.bf16.mxu0 %v1089
  %1302 = vmatpush1.bf16.msra.mxu0 %v1088
  %1303 = vmatprep.subr.bf16.mxu0 %v1091
  %1304 = vmatpush1.bf16.msra.mxu0 %v1090
  %1305 = vmatprep.subr.bf16.mxu0 %v1093
  %1306 = vmatpush1.bf16.msra.mxu0 %v1092
  %1307 = vmatprep.subr.bf16.mxu0 %v1095
  %1308 = vmatpush1.bf16.msra.mxu0 %v1094
  %1309 = vmatprep.subr.bf16.mxu0 %v1097
  %1310 = vmatpush1.bf16.msra.mxu0 %v1096
  %1311 = vmatprep.subr.bf16.mxu0 %v1099
  %1312 = vmatpush1.bf16.msra.mxu0 %v1098
  %1313 = vmatprep.subr.bf16.mxu0 %v1101
  %1314 = vmatpush1.bf16.msra.mxu0 %v1100
  %1315 = vmatprep.subr.bf16.mxu0 %v1103
  %1316 = vmatpush1.bf16.msra.mxu0 %v1102
  %1317 = vmatprep.subr.bf16.mxu0 %v1105
  %1318 = vmatpush1.bf16.msra.mxu0 %v1104
  %1319 = vmatprep.subr.bf16.mxu0 %v1107
  %1320 = vmatpush1.bf16.msra.mxu0 %v1106
  %1321 = vmatprep.subr.bf16.mxu0 %v1109
  %1322 = vmatpush1.bf16.msra.mxu0 %v1108
  %1323 = vmatprep.subr.bf16.mxu0 %v1111
  %1324 = vmatpush1.bf16.msra.mxu0 %v1110
  %1325 = vmatprep.subr.bf16.mxu0 %v1113
  %1326 = vmatpush1.bf16.msra.mxu0 %v1112
  %1327 = vmatprep.subr.bf16.mxu0 %v1115
  %1328 = vmatpush1.bf16.msra.mxu0 %v1114
  %1329 = vmatprep.subr.bf16.mxu0 %v1117
  %1330 = vmatpush1.bf16.msra.mxu0 %v1116
  %1331 = vmatprep.subr.bf16.mxu0 %v1119
  %1332 = vmatpush1.bf16.msra.mxu0 %v1118
  %1333 = vmatprep.mubr.bf16.mxu0 %v663
  %1334 = vmatmul.mubr.bf16.gmra.mrb[0].mxu0 %v662
  %v1335 = vpop.f32.mrb[0].mxu0
  %v1336 = vadd.f32 %v1283, %v1335
  %v1337 = vpop.f32.mrb[0].mxu0
  %v1338 = vadd.f32 %v1285, %v1337
  %v1339 = vpop.f32.mrb[0].mxu0
  %v1340 = vadd.f32 %v1287, %v1339
  %v1341 = vpop.f32.mrb[0].mxu0
  %v1342 = vadd.f32 %v1289, %v1341
  %1343 = vmatprep.mubr.bf16.mxu0 %v669
  %1344 = vmatmul.mubr.bf16.gmra.mrb[0].mxu0 %v668
  %v1345 = vpop.f32.mrb[0].mxu0
  %v1346 = vadd.f32 %v1293, %v1345
  %v1347 = vpop.f32.mrb[0].mxu0
  %v1348 = vadd.f32 %v1295, %v1347
  %v1349 = vpop.f32.mrb[0].mxu0
  %v1350 = vadd.f32 %v1297, %v1349
  %v1351 = vpop.f32.mrb[0].mxu0
  %v1352 = vadd.f32 %v1299, %v1351
  %1353 = vdwg.mxu0
  %1354 = vmatprep.subr.bf16.mxu0 %v1121
  %1355 = vmatpush1.bf16.msra.mxu0 %v1120
  %1356 = vmatprep.subr.bf16.mxu0 %v1123
  %1357 = vmatpush1.bf16.msra.mxu0 %v1122
  %1358 = vmatprep.subr.bf16.mxu0 %v1125
  %1359 = vmatpush1.bf16.msra.mxu0 %v1124
  %1360 = vmatprep.subr.bf16.mxu0 %v1127
  %1361 = vmatpush1.bf16.msra.mxu0 %v1126
  %1362 = vmatprep.subr.bf16.mxu0 %v1129
  %1363 = vmatpush1.bf16.msra.mxu0 %v1128
  %1364 = vmatprep.subr.bf16.mxu0 %v1131
  %1365 = vmatpush1.bf16.msra.mxu0 %v1130
  %1366 = vmatprep.subr.bf16.mxu0 %v1133
  %1367 = vmatpush1.bf16.msra.mxu0 %v1132
  %1368 = vmatprep.subr.bf16.mxu0 %v1135
  %1369 = vmatpush1.bf16.msra.mxu0 %v1134
  %1370 = vmatprep.subr.bf16.mxu0 %v1137
  %1371 = vmatpush1.bf16.msra.mxu0 %v1136
  %1372 = vmatprep.subr.bf16.mxu0 %v1139
  %1373 = vmatpush1.bf16.msra.mxu0 %v1138
  %1374 = vmatprep.subr.bf16.mxu0 %v1141
  %1375 = vmatpush1.bf16.msra.mxu0 %v1140
  %1376 = vmatprep.subr.bf16.mxu0 %v1143
  %1377 = vmatpush1.bf16.msra.mxu0 %v1142
  %1378 = vmatprep.subr.bf16.mxu0 %v1145
  %1379 = vmatpush1.bf16.msra.mxu0 %v1144
  %1380 = vmatprep.subr.bf16.mxu0 %v1147
  %1381 = vmatpush1.bf16.msra.mxu0 %v1146
  %1382 = vmatprep.subr.bf16.mxu0 %v1149
  %1383 = vmatpush1.bf16.msra.mxu0 %v1148
  %1384 = vmatprep.subr.bf16.mxu0 %v1151
  %1385 = vmatpush1.bf16.msra.mxu0 %v1150
  %1386 = vmatprep.mubr.bf16.mxu0 %v665
  %1387 = vmatmul.mubr.bf16.gmra.mrb[0].mxu0 %v664
  %v1388 = vpop.f32.mrb[0].mxu0
  %v1389 = vadd.f32 %v1336, %v1388
  %v1390 = vpop.f32.mrb[0].mxu0
  %v1391 = vadd.f32 %v1338, %v1390
  %v1392 = vpop.f32.mrb[0].mxu0
  %v1393 = vadd.f32 %v1340, %v1392
  %v1394 = vpop.f32.mrb[0].mxu0
  %v1395 = vadd.f32 %v1342, %v1394
  %1396 = vmatprep.mubr.bf16.mxu0 %v671
  %1397 = vmatmul.mubr.bf16.gmra.mrb[0].mxu0 %v670
  %v1398 = vpop.f32.mrb[0].mxu0
  %v1399 = vadd.f32 %v1346, %v1398
  %v1400 = vpop.f32.mrb[0].mxu0
  %v1401 = vadd.f32 %v1348, %v1400
  %v1402 = vpop.f32.mrb[0].mxu0
  %v1403 = vadd.f32 %v1350, %v1402
  %v1404 = vpop.f32.mrb[0].mxu0
  %v1405 = vadd.f32 %v1352, %v1404
  %1406 = vdwg.mxu0
  %v1407 = vadd.f32 %v1389, %v1393
  %v1408 = vadd.f32 %v1407, %v1399
  %v1409 = vadd.f32 %v1408, %v1403
  %v1410 = vrot.slane %v1409, 4
  %v1411 = vadd.f32 %v1409, %v1410
  %v1412 = vrot.slane %v1411, 2
  %v1413 = vadd.f32 %v1411, %v1412
  %v1414 = vrot.slane %v1413, 1
  %v1415 = vadd.f32 %v1413, %v1414
  %v1416 = vadd.f32 %v1391, %v1395
  %v1417 = vadd.f32 %v1416, %v1401
  %v1418 = vadd.f32 %v1417, %v1405
  %v1419 = vrot.slane %v1418, 4
  %v1420 = vadd.f32 %v1418, %v1419
  %v1421 = vrot.slane %v1420, 2
  %v1422 = vadd.f32 %v1420, %v1421
  %v1423 = vrot.slane %v1422, 1
  %v1424 = vadd.f32 %v1422, %v1423
  %v1425 = vmul.f32 %v1389, %v1389
  %v1426 = vmul.f32 %v1391, %v1391
  %v1427 = vmul.f32 %v1393, %v1393
  %v1428 = vmul.f32 %v1395, %v1395
  %v1429 = vmul.f32 %v1399, %v1399
  %v1430 = vmul.f32 %v1401, %v1401
  %v1431 = vmul.f32 %v1403, %v1403
  %v1432 = vmul.f32 %v1405, %v1405
  %v1433 = vadd.f32 %v1425, %v1427
  %v1434 = vadd.f32 %v1433, %v1429
  %v1435 = vadd.f32 %v1434, %v1431
  %v1436 = vrot.slane %v1435, 4
  %v1437 = vadd.f32 %v1435, %v1436
  %v1438 = vrot.slane %v1437, 2
  %v1439 = vadd.f32 %v1437, %v1438
  %v1440 = vrot.slane %v1439, 1
  %v1441 = vadd.f32 %v1439, %v1440
  %v1442 = vadd.f32 %v1426, %v1428
  %v1443 = vadd.f32 %v1442, %v1430
  %v1444 = vadd.f32 %v1443, %v1432
  %v1445 = vrot.slane %v1444, 4
  %v1446 = vadd.f32 %v1444, %v1445
  %v1447 = vrot.slane %v1446, 2
  %v1448 = vadd.f32 %v1446, %v1447
  %v1449 = vrot.slane %v1448, 1
  %v1450 = vadd.f32 %v1448, %v1449
  %vm1451 = vcmask 1040384
  %v1452 = vsel %vm1451, %v1415, %v1441
  %v1453 = vsel %vm1451, %v1424, %v1450
  %1454 = vmatprep.subr.mxu0 0.0
  %1455 = vmatpush1.msra.mxu0 %v541
  %1456 = vmatprep.subr.mxu0 0.0
  %1457 = vmatpush1.msra.mxu0 %v542
  %1458 = vmatprep.subr.mxu0 0.0
  %1459 = vmatpush1.msra.mxu0 %v543
  %1460 = vmatprep.subr.mxu0 0.0
  %1461 = vmatpush1.msra.mxu0 %v544
  %1462 = vmatprep.subr.mxu0 0.0
  %1463 = vmatpush1.msra.mxu0 %v545
  %1464 = vmatprep.subr.mxu0 0.0
  %1465 = vmatpush1.msra.mxu0 %v546
  %1466 = vmatprep.subr.mxu0 0.0
  %1467 = vmatpush1.msra.mxu0 %v547
  %1468 = vmatprep.subr.mxu0 0.0
  %1469 = vmatpush1.msra.mxu0 %v548
  %1470 = vmatprep.subr.mxu0 0.0
  %1471 = vmatpush1.msra.mxu0 %v549
  %1472 = vmatprep.subr.mxu0 0.0
  %1473 = vmatpush1.msra.mxu0 %v550
  %1474 = vmatprep.subr.mxu0 0.0
  %1475 = vmatpush1.msra.mxu0 %v551
  %1476 = vmatprep.subr.mxu0 0.0
  %1477 = vmatpush1.msra.mxu0 %v552
  %1478 = vmatprep.subr.mxu0 0.0
  %1479 = vmatpush1.msra.mxu0 %v553
  %1480 = vmatprep.subr.mxu0 0.0
  %1481 = vmatpush1.msra.mxu0 %v554
  %1482 = vmatprep.subr.mxu0 0.0
  %1483 = vmatpush1.msra.mxu0 %v555
  %1484 = vmatprep.subr.mxu0 0.0
  %1485 = vmatpush1.msra.mxu0 %v556
  %1486 = vmatprep.subr.mxu0 0.0
  %1487 = vmatpush1.msra.mxu0 %v557
  %1488 = vmatprep.subr.mxu0 0.0
  %1489 = vmatpush1.msra.mxu0 %v558
  %1490 = vmatprep.subr.mxu0 0.0
  %1491 = vmatpush1.msra.mxu0 %v559
  %1492 = vmatprep.subr.mxu0 0.0
  %1493 = vmatpush1.msra.mxu0 %v560
  %1494 = vmatprep.subr.mxu0 0.0
  %1495 = vmatpush1.msra.mxu0 %v561
  %1496 = vmatprep.subr.mxu0 0.0
  %1497 = vmatpush1.msra.mxu0 %v562
  %1498 = vmatprep.subr.mxu0 0.0
  %1499 = vmatpush1.msra.mxu0 %v563
  %1500 = vmatprep.subr.mxu0 0.0
  %1501 = vmatpush1.msra.mxu0 %v564
  %1502 = vmatprep.subr.mxu0 0.0
  %1503 = vmatpush1.msra.mxu0 %v565
  %1504 = vmatprep.subr.mxu0 0.0
  %1505 = vmatpush1.msra.mxu0 %v566
  %1506 = vmatprep.subr.mxu0 0.0
  %1507 = vmatpush1.msra.mxu0 %v567
  %1508 = vmatprep.subr.mxu0 0.0
  %1509 = vmatpush1.msra.mxu0 %v568
  %1510 = vmatprep.subr.mxu0 0.0
  %1511 = vmatpush1.msra.mxu0 %v569
  %1512 = vmatprep.subr.mxu0 0.0
  %1513 = vmatpush1.msra.mxu0 %v570
  %1514 = vmatprep.subr.mxu0 0.0
  %1515 = vmatpush1.msra.mxu0 %v571
  %1516 = vmatprep.subr.mxu0 0.0
  %1517 = vmatpush1.msra.mxu0 %v572
  %1518 = vmatprep.mubr.f32.mxu0 %v1453
  %1519 = vmatmul.mubr.f32.gmra.mrb[0].mxu0 %v1452
  %v1520 = vpop.f32.mrb[0].mxu0
  %v1521 = vadd.f32 0.0, %v1520
  %v1522 = vpop.f32.mrb[0].mxu0
  %1523 = vdwg.mxu0
  %v1524 = vmul.f32 %v1521, 0.001953125
  %v1525 = vmul.f32 %v1524, %v1524
  %v1527 = vrot.slane %v1525, 7
  %v1529 = vsub.f32 %v1524, %v1527
  %v1530 = vmax.f32 %v1529, 0.0
  %v1531 = vld [vmem:[%s3] sm:$0x1]
  %v1532 = vadd.f32 %v1530, 1e-05
  %v1533 = vrsqrt.pop %v1532
  %v1536 = vunpack.c.l.s4 1966171168
  %v1537 = vunpack.c.0.s8 %v1536
  %v1538 = vlaneseq
  %v1539 = vshrl.u32 %v1538, 7
  %v1540 = vsub.s32 %v1537, %v1539
  %v1541 = vrot.slane %v1533, %v1540
  %v1542 = vcombine.high %v1541, %v1541
  %v1544 = vunpack.c.l.s4 1966171168
  %v1545 = vunpack.c.0.s8 %v1544
  %v1546 = vlaneseq
  %v1547 = vshrl.u32 %v1546, 7
  %v1548 = vsub.s32 %v1545, %v1547
  %v1549 = vrot.slane %v1542, %v1548
  %v1551 = vmul.f32 %v1531, %v1549
  %v1552 = vld [vmem:[%s4] sm:$0x1]
  %v1553 = vmul.f32 %v1524, %v1551
  %v1554 = vsub.f32 %v1552, %v1553
  %v1556 = vlaneseq
  %v1557 = vshrl.u32 %v1556, 7
  %v1558 = vsub.s32 0, %v1557
  %v1559 = vrot.slane %v1554, %v1558
  %v1561 = vsel %vm1451, %v1551, %v1559
  %vm1562 = vcmask 130048
  %v1564 = vsel %vm1562, %v1561, 0
  %1566 = vmatprep.subr.mxu0 %v607
  %1567 = vmatpush1.msra.mxu0 %v606
  %1568 = vmatprep.subr.mxu0 %v609
  %1569 = vmatpush1.msra.mxu0 %v608
  %1570 = vmatprep.subr.mxu0 0.0
  %1571 = vmatpush1.msra.mxu0 0.0
  %1572 = vmatprep.subr.mxu0 0.0
  %1573 = vmatpush1.msra.mxu0 0.0
  %1574 = vmatprep.subr.mxu0 0.0
  %1575 = vmatpush1.msra.mxu0 0.0
  %1576 = vmatprep.subr.mxu0 0.0
  %1577 = vmatpush1.msra.mxu0 0.0
  %1578 = vmatprep.subr.mxu0 0.0
  %1579 = vmatpush1.msra.mxu0 0.0
  %1580 = vmatprep.subr.mxu0 0.0
  %1581 = vmatpush1.msra.mxu0 0.0
  %1582 = vmatprep.subr.mxu0 0.0
  %1583 = vmatpush1.msra.mxu0 0.0
  %1584 = vmatprep.subr.mxu0 0.0
  %1585 = vmatpush1.msra.mxu0 0.0
  %1586 = vmatprep.subr.mxu0 0.0
  %1587 = vmatpush1.msra.mxu0 0.0
  %1588 = vmatprep.subr.mxu0 0.0
  %1589 = vmatpush1.msra.mxu0 0.0
  %1590 = vmatprep.subr.mxu0 0.0
  %1591 = vmatpush1.msra.mxu0 0.0
  %1592 = vmatprep.subr.mxu0 0.0
  %1593 = vmatpush1.msra.mxu0 0.0
  %1594 = vmatprep.subr.mxu0 0.0
  %1595 = vmatpush1.msra.mxu0 0.0
  %1596 = vmatprep.subr.mxu0 0.0
  %1597 = vmatpush1.msra.mxu0 0.0
  %1598 = vmatprep.subr.mxu0 0.0
  %1599 = vmatpush1.msra.mxu0 0.0
  %1600 = vmatprep.subr.mxu0 0.0
  %1601 = vmatpush1.msra.mxu0 0.0
  %1602 = vmatprep.subr.mxu0 0.0
  %1603 = vmatpush1.msra.mxu0 0.0
  %1604 = vmatprep.subr.mxu0 0.0
  %1605 = vmatpush1.msra.mxu0 0.0
  %1606 = vmatprep.subr.mxu0 0.0
  %1607 = vmatpush1.msra.mxu0 0.0
  %1608 = vmatprep.subr.mxu0 0.0
  %1609 = vmatpush1.msra.mxu0 0.0
  %1610 = vmatprep.subr.mxu0 0.0
  %1611 = vmatpush1.msra.mxu0 0.0
  %1612 = vmatprep.subr.mxu0 0.0
  %1613 = vmatpush1.msra.mxu0 0.0
  %1614 = vmatprep.subr.mxu0 0.0
  %1615 = vmatpush1.msra.mxu0 0.0
  %1616 = vmatprep.subr.mxu0 0.0
  %1617 = vmatpush1.msra.mxu0 0.0
  %1618 = vmatprep.subr.mxu0 0.0
  %1619 = vmatpush1.msra.mxu0 0.0
  %1620 = vmatprep.subr.mxu0 0.0
  %1621 = vmatpush1.msra.mxu0 0.0
  %1622 = vmatprep.subr.mxu0 0.0
  %1623 = vmatpush1.msra.mxu0 0.0
  %1624 = vmatprep.subr.mxu0 0.0
  %1625 = vmatpush1.msra.mxu0 0.0
  %1626 = vmatprep.subr.mxu0 0.0
  %1627 = vmatpush1.msra.mxu0 0.0
  %1628 = vmatprep.subr.mxu0 0.0
  %1629 = vmatpush1.msra.mxu0 0.0
  %1630 = vmatprep.mubr.f32.mxu0 0.0
  %1631 = vmatmul.mubr.f32.gmra.mrb[0].mxu0 %v1564
  %v1632 = vpop.f32.mrb[0].mxu0
  %v1633 = vadd.f32 0.0, %v1632
  %v1634 = vpop.f32.mrb[0].mxu0
  %v1635 = vadd.f32 0.0, %v1634
  %1636 = vdwg.mxu0
  %v1637 = vlaneseq
  %v1638 = vshrl.u32 %v1637, 7
  %v1639 = vsub.s32 0, %v1638
  %v1640 = vrot.slane %v1633, %v1639
  %v1641 = vlaneseq
  %v1642 = vshrl.u32 %v1641, 7
  %v1643 = vsub.s32 0, %v1642
  %v1644 = vrot.slane %v1635, %v1643
  %v1645 = vmul.f32 %v1389, %v1640
  %v1646 = vmul.f32 %v1391, %v1644
  %v1647 = vmul.f32 %v1393, %v1640
  %v1648 = vmul.f32 %v1395, %v1644
  %v1649 = vmul.f32 %v1399, %v1640
  %v1650 = vmul.f32 %v1401, %v1644
  %v1651 = vmul.f32 %v1403, %v1640
  %v1652 = vmul.f32 %v1405, %v1644
  %v1653 = vlaneseq
  %v1654 = vshrl.u32 %v1653, 7
  %v1655 = vsub.s32 1, %v1654
  %v1656 = vrot.slane %v1633, %v1655
  %v1657 = vlaneseq
  %v1658 = vshrl.u32 %v1657, 7
  %v1659 = vsub.s32 1, %v1658
  %v1660 = vrot.slane %v1635, %v1659
  %v1661 = vadd.f32 %v1645, %v1656
  %v1662 = vadd.f32 %v1646, %v1660
  %v1663 = vadd.f32 %v1647, %v1656
  %v1664 = vadd.f32 %v1648, %v1660
  %v1665 = vadd.f32 %v1649, %v1656
  %v1666 = vadd.f32 %v1650, %v1660
  %v1667 = vadd.f32 %v1651, %v1656
  %v1668 = vadd.f32 %v1652, %v1660
  %v1669 = vmax.f32 %v1661, 0.0
  %v1670 = vmax.f32 %v1662, 0.0
  %v1671 = vmax.f32 %v1663, 0.0
  %v1672 = vmax.f32 %v1664, 0.0
  %v1673 = vmax.f32 %v1665, 0.0
  %v1674 = vmax.f32 %v1666, 0.0
  %v1675 = vmax.f32 %v1667, 0.0
  %v1676 = vmax.f32 %v1668, 0.0
  %v1677 = vrot.slane %v1669, 7
  %v1678 = vrot.slane %v1670, 7
  %v1679 = vrot.slane %v1671, 7
  %v1680 = vrot.slane %v1672, 7
  %v1681 = vrot.slane %v1673, 7
  %v1682 = vrot.slane %v1674, 7
  %v1683 = vrot.slane %v1675, 7
  %v1684 = vrot.slane %v1676, 7
  %v1685 = vsel %vm618, %v1681, %v1683
  %v1686 = vsel %vm618, %v1682, %v1684
  %v1687 = vsel %vm618, %v1679, %v1681
  %v1688 = vsel %vm618, %v1680, %v1682
  %v1689 = vsel %vm618, %v1677, %v1679
  %v1690 = vsel %vm618, %v1678, %v1680
  %v1691 = vsel %vm618, %v1683, %v1677
  %v1692 = vsel %vm618, %v1684, %v1678
  %v1693 = vmul.f32 %v1691, %v95
  %v1694 = vmul.f32 %v1692, %v95
  %v1695 = vmul.f32 %v1689, %v96
  %v1696 = vmul.f32 %v1690, %v96
  %v1697 = vmul.f32 %v1687, %v97
  %v1698 = vmul.f32 %v1688, %v97
  %v1699 = vmul.f32 %v1685, %v98
  %v1700 = vmul.f32 %v1686, %v98
  %v1701 = vrot.slane %v1669, 1
  %v1702 = vrot.slane %v1670, 1
  %v1703 = vrot.slane %v1671, 1
  %v1704 = vrot.slane %v1672, 1
  %v1705 = vrot.slane %v1673, 1
  %v1706 = vrot.slane %v1674, 1
  %v1707 = vrot.slane %v1675, 1
  %v1708 = vrot.slane %v1676, 1
  %v1709 = vsel %vm643, %v1705, %v1707
  %v1710 = vsel %vm643, %v1706, %v1708
  %v1711 = vsel %vm643, %v1703, %v1705
  %v1712 = vsel %vm643, %v1704, %v1706
  %v1713 = vsel %vm643, %v1701, %v1703
  %v1714 = vsel %vm643, %v1702, %v1704
  %v1715 = vsel %vm643, %v1707, %v1701
  %v1716 = vsel %vm643, %v1708, %v1702
  %v1717 = vmul.f32 %v1713, %v107
  %v1718 = vmul.f32 %v1714, %v107
  %v1719 = vmul.f32 %v1711, %v108
  %v1720 = vmul.f32 %v1712, %v108
  %v1721 = vmul.f32 %v1709, %v109
  %v1722 = vmul.f32 %v1710, %v109
  %v1723 = vmul.f32 %v1715, %v110
  %v1724 = vmul.f32 %v1716, %v110
  %v1725 = vpack.c.bf16 %v1695, %v1693
  %v1726 = vpack.c.bf16 %v1696, %v1694
  %v1727 = vpack.c.bf16 %v1671, %v1669
  %v1728 = vpack.c.bf16 %v1672, %v1670
  %v1729 = vpack.c.bf16 %v1719, %v1717
  %v1730 = vpack.c.bf16 %v1720, %v1718
  %v1731 = vpack.c.bf16 %v1699, %v1697
  %v1732 = vpack.c.bf16 %v1700, %v1698
  %v1733 = vpack.c.bf16 %v1675, %v1673
  %v1734 = vpack.c.bf16 %v1676, %v1674
  %v1735 = vpack.c.bf16 %v1723, %v1721
  %v1736 = vpack.c.bf16 %v1724, %v1722
  %v1737 = vld [vmem:[%s2] sm:$0xff]
  %v1738 = vld [vmem:[%s2 + $0x8] sm:$0xff]
  %v1739 = vld [vmem:[%s2 + $0x10] sm:$0xff]
  %v1740 = vld [vmem:[%s2 + $0x18] sm:$0xff]
  %v1741 = vld [vmem:[%s2 + $0x20] sm:$0xff]
  %v1742 = vld [vmem:[%s2 + $0x28] sm:$0xff]
  %v1743 = vld [vmem:[%s2 + $0x30] sm:$0xff]
  %v1744 = vld [vmem:[%s2 + $0x38] sm:$0xff]
  %v1745 = vld [vmem:[%s2 + $0x40] sm:$0xff]
  %v1746 = vld [vmem:[%s2 + $0x48] sm:$0xff]
  %v1747 = vld [vmem:[%s2 + $0x50] sm:$0xff]
  %v1748 = vld [vmem:[%s2 + $0x58] sm:$0xff]
  %v1749 = vld [vmem:[%s2 + $0x60] sm:$0xff]
  %v1750 = vld [vmem:[%s2 + $0x68] sm:$0xff]
  %v1751 = vld [vmem:[%s2 + $0x70] sm:$0xff]
  %v1752 = vld [vmem:[%s2 + $0x78] sm:$0xff]
  %v1753 = vld [vmem:[%s2 + $0x80] sm:$0xff]
  %v1754 = vld [vmem:[%s2 + $0x88] sm:$0xff]
  %v1755 = vld [vmem:[%s2 + $0x90] sm:$0xff]
  %v1756 = vld [vmem:[%s2 + $0x98] sm:$0xff]
  %v1757 = vld [vmem:[%s2 + $0xa0] sm:$0xff]
  %v1758 = vld [vmem:[%s2 + $0xa8] sm:$0xff]
  %v1759 = vld [vmem:[%s2 + $0xb0] sm:$0xff]
  %v1760 = vld [vmem:[%s2 + $0xb8] sm:$0xff]
  %v1761 = vld [vmem:[%s2 + $0xc0] sm:$0xff]
  %v1762 = vld [vmem:[%s2 + $0xc8] sm:$0xff]
  %v1763 = vld [vmem:[%s2 + $0xd0] sm:$0xff]
  %v1764 = vld [vmem:[%s2 + $0xd8] sm:$0xff]
  %v1765 = vld [vmem:[%s2 + $0xe0] sm:$0xff]
  %v1766 = vld [vmem:[%s2 + $0xe8] sm:$0xff]
  %v1767 = vld [vmem:[%s2 + $0xf0] sm:$0xff]
  %v1768 = vld [vmem:[%s2 + $0xf8] sm:$0xff]
  %v1769 = vld [vmem:[%s2 + $0x100] sm:$0xff]
  %v1770 = vld [vmem:[%s2 + $0x108] sm:$0xff]
  %v1771 = vld [vmem:[%s2 + $0x110] sm:$0xff]
  %v1772 = vld [vmem:[%s2 + $0x118] sm:$0xff]
  %v1773 = vld [vmem:[%s2 + $0x120] sm:$0xff]
  %v1774 = vld [vmem:[%s2 + $0x128] sm:$0xff]
  %v1775 = vld [vmem:[%s2 + $0x130] sm:$0xff]
  %v1776 = vld [vmem:[%s2 + $0x138] sm:$0xff]
  %v1777 = vld [vmem:[%s2 + $0x140] sm:$0xff]
  %v1778 = vld [vmem:[%s2 + $0x148] sm:$0xff]
  %v1779 = vld [vmem:[%s2 + $0x150] sm:$0xff]
  %v1780 = vld [vmem:[%s2 + $0x158] sm:$0xff]
  %v1781 = vld [vmem:[%s2 + $0x160] sm:$0xff]
  %v1782 = vld [vmem:[%s2 + $0x168] sm:$0xff]
  %v1783 = vld [vmem:[%s2 + $0x170] sm:$0xff]
  %v1784 = vld [vmem:[%s2 + $0x178] sm:$0xff]
  %v1785 = vld [vmem:[%s2 + $0x180] sm:$0xff]
  %v1786 = vld [vmem:[%s2 + $0x188] sm:$0xff]
  %v1787 = vld [vmem:[%s2 + $0x190] sm:$0xff]
  %v1788 = vld [vmem:[%s2 + $0x198] sm:$0xff]
  %v1789 = vld [vmem:[%s2 + $0x1a0] sm:$0xff]
  %v1790 = vld [vmem:[%s2 + $0x1a8] sm:$0xff]
  %v1791 = vld [vmem:[%s2 + $0x1b0] sm:$0xff]
  %v1792 = vld [vmem:[%s2 + $0x1b8] sm:$0xff]
  %v1793 = vld [vmem:[%s2 + $0x1c0] sm:$0xff]
  %v1794 = vld [vmem:[%s2 + $0x1c8] sm:$0xff]
  %v1795 = vld [vmem:[%s2 + $0x1d0] sm:$0xff]
  %v1796 = vld [vmem:[%s2 + $0x1d8] sm:$0xff]
  %v1797 = vld [vmem:[%s2 + $0x1e0] sm:$0xff]
  %v1798 = vld [vmem:[%s2 + $0x1e8] sm:$0xff]
  %v1799 = vld [vmem:[%s2 + $0x1f0] sm:$0xff]
  %v1800 = vld [vmem:[%s2 + $0x1f8] sm:$0xff]
  %v1801 = vld [vmem:[%s2 + $0x200] sm:$0xff]
  %v1802 = vld [vmem:[%s2 + $0x208] sm:$0xff]
  %v1803 = vld [vmem:[%s2 + $0x210] sm:$0xff]
  %v1804 = vld [vmem:[%s2 + $0x218] sm:$0xff]
  %v1805 = vld [vmem:[%s2 + $0x220] sm:$0xff]
  %v1806 = vld [vmem:[%s2 + $0x228] sm:$0xff]
  %v1807 = vld [vmem:[%s2 + $0x230] sm:$0xff]
  %v1808 = vld [vmem:[%s2 + $0x238] sm:$0xff]
  %v1809 = vld [vmem:[%s2 + $0x240] sm:$0xff]
  %v1810 = vld [vmem:[%s2 + $0x248] sm:$0xff]
  %v1811 = vld [vmem:[%s2 + $0x250] sm:$0xff]
  %v1812 = vld [vmem:[%s2 + $0x258] sm:$0xff]
  %v1813 = vld [vmem:[%s2 + $0x260] sm:$0xff]
  %v1814 = vld [vmem:[%s2 + $0x268] sm:$0xff]
  %v1815 = vld [vmem:[%s2 + $0x270] sm:$0xff]
  %v1816 = vld [vmem:[%s2 + $0x278] sm:$0xff]
  %v1817 = vld [vmem:[%s2 + $0x280] sm:$0xff]
  %v1818 = vld [vmem:[%s2 + $0x288] sm:$0xff]
  %v1819 = vld [vmem:[%s2 + $0x290] sm:$0xff]
  %v1820 = vld [vmem:[%s2 + $0x298] sm:$0xff]
  %v1821 = vld [vmem:[%s2 + $0x2a0] sm:$0xff]
  %v1822 = vld [vmem:[%s2 + $0x2a8] sm:$0xff]
  %v1823 = vld [vmem:[%s2 + $0x2b0] sm:$0xff]
  %v1824 = vld [vmem:[%s2 + $0x2b8] sm:$0xff]
  %v1825 = vld [vmem:[%s2 + $0x2c0] sm:$0xff]
  %v1826 = vld [vmem:[%s2 + $0x2c8] sm:$0xff]
  %v1827 = vld [vmem:[%s2 + $0x2d0] sm:$0xff]
  %v1828 = vld [vmem:[%s2 + $0x2d8] sm:$0xff]
  %v1829 = vld [vmem:[%s2 + $0x2e0] sm:$0xff]
  %v1830 = vld [vmem:[%s2 + $0x2e8] sm:$0xff]
  %v1831 = vld [vmem:[%s2 + $0x2f0] sm:$0xff]
  %v1832 = vld [vmem:[%s2 + $0x2f8] sm:$0xff]
  %v1929 = vunpack.c.l.b16 %v1737
  %v1930 = vunpack.c.h.b16 %v1737
  %v1931 = vunpack.c.l.b16 %v1738
  %v1932 = vunpack.c.h.b16 %v1738
  %v1933 = vunpack.c.l.b16 %v1739
  %v1934 = vunpack.c.h.b16 %v1739
  %v1935 = vunpack.c.l.b16 %v1740
  %v1936 = vunpack.c.h.b16 %v1740
  %v1937 = vunpack.c.l.b16 %v1741
  %v1938 = vunpack.c.h.b16 %v1741
  %v1939 = vunpack.c.l.b16 %v1742
  %v1940 = vunpack.c.h.b16 %v1742
  %v1941 = vunpack.c.l.b16 %v1743
  %v1942 = vunpack.c.h.b16 %v1743
  %v1943 = vunpack.c.l.b16 %v1744
  %v1944 = vunpack.c.h.b16 %v1744
  %v1945 = vunpack.c.l.b16 %v1745
  %v1946 = vunpack.c.h.b16 %v1745
  %v1947 = vunpack.c.l.b16 %v1746
  %v1948 = vunpack.c.h.b16 %v1746
  %v1949 = vunpack.c.l.b16 %v1747
  %v1950 = vunpack.c.h.b16 %v1747
  %v1951 = vunpack.c.l.b16 %v1748
  %v1952 = vunpack.c.h.b16 %v1748
  %v1953 = vunpack.c.l.b16 %v1749
  %v1954 = vunpack.c.h.b16 %v1749
  %v1955 = vunpack.c.l.b16 %v1750
  %v1956 = vunpack.c.h.b16 %v1750
  %v1957 = vunpack.c.l.b16 %v1751
  %v1958 = vunpack.c.h.b16 %v1751
  %v1959 = vunpack.c.l.b16 %v1752
  %v1960 = vunpack.c.h.b16 %v1752
  %v1961 = vunpack.c.l.b16 %v1753
  %v1962 = vunpack.c.h.b16 %v1753
  %v1963 = vunpack.c.l.b16 %v1754
  %v1964 = vunpack.c.h.b16 %v1754
  %v1965 = vunpack.c.l.b16 %v1755
  %v1966 = vunpack.c.h.b16 %v1755
  %v1967 = vunpack.c.l.b16 %v1756
  %v1968 = vunpack.c.h.b16 %v1756
  %v1969 = vunpack.c.l.b16 %v1757
  %v1970 = vunpack.c.h.b16 %v1757
  %v1971 = vunpack.c.l.b16 %v1758
  %v1972 = vunpack.c.h.b16 %v1758
  %v1973 = vunpack.c.l.b16 %v1759
  %v1974 = vunpack.c.h.b16 %v1759
  %v1975 = vunpack.c.l.b16 %v1760
  %v1976 = vunpack.c.h.b16 %v1760
  %v1977 = vunpack.c.l.b16 %v1761
  %v1978 = vunpack.c.h.b16 %v1761
  %v1979 = vunpack.c.l.b16 %v1762
  %v1980 = vunpack.c.h.b16 %v1762
  %v1981 = vunpack.c.l.b16 %v1763
  %v1982 = vunpack.c.h.b16 %v1763
  %v1983 = vunpack.c.l.b16 %v1764
  %v1984 = vunpack.c.h.b16 %v1764
  %v1985 = vunpack.c.l.b16 %v1765
  %v1986 = vunpack.c.h.b16 %v1765
  %v1987 = vunpack.c.l.b16 %v1766
  %v1988 = vunpack.c.h.b16 %v1766
  %v1989 = vunpack.c.l.b16 %v1767
  %v1990 = vunpack.c.h.b16 %v1767
  %v1991 = vunpack.c.l.b16 %v1768
  %v1992 = vunpack.c.h.b16 %v1768
  %v1993 = vunpack.c.l.b16 %v1769
  %v1994 = vunpack.c.h.b16 %v1769
  %v1995 = vunpack.c.l.b16 %v1770
  %v1996 = vunpack.c.h.b16 %v1770
  %v1997 = vunpack.c.l.b16 %v1771
  %v1998 = vunpack.c.h.b16 %v1771
  %v1999 = vunpack.c.l.b16 %v1772
  %v2000 = vunpack.c.h.b16 %v1772
  %v2001 = vunpack.c.l.b16 %v1773
  %v2002 = vunpack.c.h.b16 %v1773
  %v2003 = vunpack.c.l.b16 %v1774
  %v2004 = vunpack.c.h.b16 %v1774
  %v2005 = vunpack.c.l.b16 %v1775
  %v2006 = vunpack.c.h.b16 %v1775
  %v2007 = vunpack.c.l.b16 %v1776
  %v2008 = vunpack.c.h.b16 %v1776
  %v2009 = vunpack.c.l.b16 %v1777
  %v2010 = vunpack.c.h.b16 %v1777
  %v2011 = vunpack.c.l.b16 %v1778
  %v2012 = vunpack.c.h.b16 %v1778
  %v2013 = vunpack.c.l.b16 %v1779
  %v2014 = vunpack.c.h.b16 %v1779
  %v2015 = vunpack.c.l.b16 %v1780
  %v2016 = vunpack.c.h.b16 %v1780
  %v2017 = vunpack.c.l.b16 %v1781
  %v2018 = vunpack.c.h.b16 %v1781
  %v2019 = vunpack.c.l.b16 %v1782
  %v2020 = vunpack.c.h.b16 %v1782
  %v2021 = vunpack.c.l.b16 %v1783
  %v2022 = vunpack.c.h.b16 %v1783
  %v2023 = vunpack.c.l.b16 %v1784
  %v2024 = vunpack.c.h.b16 %v1784
  %v2025 = vunpack.c.l.b16 %v1785
  %v2026 = vunpack.c.h.b16 %v1785
  %v2027 = vunpack.c.l.b16 %v1786
  %v2028 = vunpack.c.h.b16 %v1786
  %v2029 = vunpack.c.l.b16 %v1787
  %v2030 = vunpack.c.h.b16 %v1787
  %v2031 = vunpack.c.l.b16 %v1788
  %v2032 = vunpack.c.h.b16 %v1788
  %v2033 = vunpack.c.l.b16 %v1789
  %v2034 = vunpack.c.h.b16 %v1789
  %v2035 = vunpack.c.l.b16 %v1790
  %v2036 = vunpack.c.h.b16 %v1790
  %v2037 = vunpack.c.l.b16 %v1791
  %v2038 = vunpack.c.h.b16 %v1791
  %v2039 = vunpack.c.l.b16 %v1792
  %v2040 = vunpack.c.h.b16 %v1792
  %v2041 = vunpack.c.l.b16 %v1793
  %v2042 = vunpack.c.h.b16 %v1793
  %v2043 = vunpack.c.l.b16 %v1794
  %v2044 = vunpack.c.h.b16 %v1794
  %v2045 = vunpack.c.l.b16 %v1795
  %v2046 = vunpack.c.h.b16 %v1795
  %v2047 = vunpack.c.l.b16 %v1796
  %v2048 = vunpack.c.h.b16 %v1796
  %v2049 = vunpack.c.l.b16 %v1797
  %v2050 = vunpack.c.h.b16 %v1797
  %v2051 = vunpack.c.l.b16 %v1798
  %v2052 = vunpack.c.h.b16 %v1798
  %v2053 = vunpack.c.l.b16 %v1799
  %v2054 = vunpack.c.h.b16 %v1799
  %v2055 = vunpack.c.l.b16 %v1800
  %v2056 = vunpack.c.h.b16 %v1800
  %v2057 = vunpack.c.l.b16 %v1801
  %v2058 = vunpack.c.h.b16 %v1801
  %v2059 = vunpack.c.l.b16 %v1802
  %v2060 = vunpack.c.h.b16 %v1802
  %v2061 = vunpack.c.l.b16 %v1803
  %v2062 = vunpack.c.h.b16 %v1803
  %v2063 = vunpack.c.l.b16 %v1804
  %v2064 = vunpack.c.h.b16 %v1804
  %v2065 = vunpack.c.l.b16 %v1805
  %v2066 = vunpack.c.h.b16 %v1805
  %v2067 = vunpack.c.l.b16 %v1806
  %v2068 = vunpack.c.h.b16 %v1806
  %v2069 = vunpack.c.l.b16 %v1807
  %v2070 = vunpack.c.h.b16 %v1807
  %v2071 = vunpack.c.l.b16 %v1808
  %v2072 = vunpack.c.h.b16 %v1808
  %v2073 = vunpack.c.l.b16 %v1809
  %v2074 = vunpack.c.h.b16 %v1809
  %v2075 = vunpack.c.l.b16 %v1810
  %v2076 = vunpack.c.h.b16 %v1810
  %v2077 = vunpack.c.l.b16 %v1811
  %v2078 = vunpack.c.h.b16 %v1811
  %v2079 = vunpack.c.l.b16 %v1812
  %v2080 = vunpack.c.h.b16 %v1812
  %v2081 = vunpack.c.l.b16 %v1813
  %v2082 = vunpack.c.h.b16 %v1813
  %v2083 = vunpack.c.l.b16 %v1814
  %v2084 = vunpack.c.h.b16 %v1814
  %v2085 = vunpack.c.l.b16 %v1815
  %v2086 = vunpack.c.h.b16 %v1815
  %v2087 = vunpack.c.l.b16 %v1816
  %v2088 = vunpack.c.h.b16 %v1816
  %v2089 = vunpack.c.l.b16 %v1817
  %v2090 = vunpack.c.h.b16 %v1817
  %v2091 = vunpack.c.l.b16 %v1818
  %v2092 = vunpack.c.h.b16 %v1818
  %v2093 = vunpack.c.l.b16 %v1819
  %v2094 = vunpack.c.h.b16 %v1819
  %v2095 = vunpack.c.l.b16 %v1820
  %v2096 = vunpack.c.h.b16 %v1820
  %v2097 = vunpack.c.l.b16 %v1821
  %v2098 = vunpack.c.h.b16 %v1821
  %v2099 = vunpack.c.l.b16 %v1822
  %v2100 = vunpack.c.h.b16 %v1822
  %v2101 = vunpack.c.l.b16 %v1823
  %v2102 = vunpack.c.h.b16 %v1823
  %v2103 = vunpack.c.l.b16 %v1824
  %v2104 = vunpack.c.h.b16 %v1824
  %v2105 = vunpack.c.l.b16 %v1825
  %v2106 = vunpack.c.h.b16 %v1825
  %v2107 = vunpack.c.l.b16 %v1826
  %v2108 = vunpack.c.h.b16 %v1826
  %v2109 = vunpack.c.l.b16 %v1827
  %v2110 = vunpack.c.h.b16 %v1827
  %v2111 = vunpack.c.l.b16 %v1828
  %v2112 = vunpack.c.h.b16 %v1828
  %v2113 = vunpack.c.l.b16 %v1829
  %v2114 = vunpack.c.h.b16 %v1829
  %v2115 = vunpack.c.l.b16 %v1830
  %v2116 = vunpack.c.h.b16 %v1830
  %v2117 = vunpack.c.l.b16 %v1831
  %v2118 = vunpack.c.h.b16 %v1831
  %v2119 = vunpack.c.l.b16 %v1832
  %v2120 = vunpack.c.h.b16 %v1832
  %v2121 = vpack.c.b16 %v1931, %v1929
  %v2122 = vpack.c.b16 %v1932, %v1930
  %v2123 = vpack.c.b16 %v1935, %v1933
  %v2124 = vpack.c.b16 %v1936, %v1934
  %v2125 = vpack.c.b16 %v1939, %v1937
  %v2126 = vpack.c.b16 %v1940, %v1938
  %v2127 = vpack.c.b16 %v1943, %v1941
  %v2128 = vpack.c.b16 %v1944, %v1942
  %v2129 = vpack.c.b16 %v1947, %v1945
  %v2130 = vpack.c.b16 %v1948, %v1946
  %v2131 = vpack.c.b16 %v1951, %v1949
  %v2132 = vpack.c.b16 %v1952, %v1950
  %v2133 = vpack.c.b16 %v1955, %v1953
  %v2134 = vpack.c.b16 %v1956, %v1954
  %v2135 = vpack.c.b16 %v1959, %v1957
  %v2136 = vpack.c.b16 %v1960, %v1958
  %v2137 = vpack.c.b16 %v1963, %v1961
  %v2138 = vpack.c.b16 %v1964, %v1962
  %v2139 = vpack.c.b16 %v1967, %v1965
  %v2140 = vpack.c.b16 %v1968, %v1966
  %v2141 = vpack.c.b16 %v1971, %v1969
  %v2142 = vpack.c.b16 %v1972, %v1970
  %v2143 = vpack.c.b16 %v1975, %v1973
  %v2144 = vpack.c.b16 %v1976, %v1974
  %v2145 = vpack.c.b16 %v1979, %v1977
  %v2146 = vpack.c.b16 %v1980, %v1978
  %v2147 = vpack.c.b16 %v1983, %v1981
  %v2148 = vpack.c.b16 %v1984, %v1982
  %v2149 = vpack.c.b16 %v1987, %v1985
  %v2150 = vpack.c.b16 %v1988, %v1986
  %v2151 = vpack.c.b16 %v1991, %v1989
  %v2152 = vpack.c.b16 %v1992, %v1990
  %v2153 = vpack.c.b16 %v1995, %v1993
  %v2154 = vpack.c.b16 %v1996, %v1994
  %v2155 = vpack.c.b16 %v1999, %v1997
  %v2156 = vpack.c.b16 %v2000, %v1998
  %v2157 = vpack.c.b16 %v2003, %v2001
  %v2158 = vpack.c.b16 %v2004, %v2002
  %v2159 = vpack.c.b16 %v2007, %v2005
  %v2160 = vpack.c.b16 %v2008, %v2006
  %v2161 = vpack.c.b16 %v2011, %v2009
  %v2162 = vpack.c.b16 %v2012, %v2010
  %v2163 = vpack.c.b16 %v2015, %v2013
  %v2164 = vpack.c.b16 %v2016, %v2014
  %v2165 = vpack.c.b16 %v2019, %v2017
  %v2166 = vpack.c.b16 %v2020, %v2018
  %v2167 = vpack.c.b16 %v2023, %v2021
  %v2168 = vpack.c.b16 %v2024, %v2022
  %v2169 = vpack.c.b16 %v2027, %v2025
  %v2170 = vpack.c.b16 %v2028, %v2026
  %v2171 = vpack.c.b16 %v2031, %v2029
  %v2172 = vpack.c.b16 %v2032, %v2030
  %v2173 = vpack.c.b16 %v2035, %v2033
  %v2174 = vpack.c.b16 %v2036, %v2034
  %v2175 = vpack.c.b16 %v2039, %v2037
  %v2176 = vpack.c.b16 %v2040, %v2038
  %v2177 = vpack.c.b16 %v2043, %v2041
  %v2178 = vpack.c.b16 %v2044, %v2042
  %v2179 = vpack.c.b16 %v2047, %v2045
  %v2180 = vpack.c.b16 %v2048, %v2046
  %v2181 = vpack.c.b16 %v2051, %v2049
  %v2182 = vpack.c.b16 %v2052, %v2050
  %v2183 = vpack.c.b16 %v2055, %v2053
  %v2184 = vpack.c.b16 %v2056, %v2054
  %v2185 = vpack.c.b16 %v2059, %v2057
  %v2186 = vpack.c.b16 %v2060, %v2058
  %v2187 = vpack.c.b16 %v2063, %v2061
  %v2188 = vpack.c.b16 %v2064, %v2062
  %v2189 = vpack.c.b16 %v2067, %v2065
  %v2190 = vpack.c.b16 %v2068, %v2066
  %v2191 = vpack.c.b16 %v2071, %v2069
  %v2192 = vpack.c.b16 %v2072, %v2070
  %v2193 = vpack.c.b16 %v2075, %v2073
  %v2194 = vpack.c.b16 %v2076, %v2074
  %v2195 = vpack.c.b16 %v2079, %v2077
  %v2196 = vpack.c.b16 %v2080, %v2078
  %v2197 = vpack.c.b16 %v2083, %v2081
  %v2198 = vpack.c.b16 %v2084, %v2082
  %v2199 = vpack.c.b16 %v2087, %v2085
  %v2200 = vpack.c.b16 %v2088, %v2086
  %v2201 = vpack.c.b16 %v2091, %v2089
  %v2202 = vpack.c.b16 %v2092, %v2090
  %v2203 = vpack.c.b16 %v2095, %v2093
  %v2204 = vpack.c.b16 %v2096, %v2094
  %v2205 = vpack.c.b16 %v2099, %v2097
  %v2206 = vpack.c.b16 %v2100, %v2098
  %v2207 = vpack.c.b16 %v2103, %v2101
  %v2208 = vpack.c.b16 %v2104, %v2102
  %v2209 = vpack.c.b16 %v2107, %v2105
  %v2210 = vpack.c.b16 %v2108, %v2106
  %v2211 = vpack.c.b16 %v2111, %v2109
  %v2212 = vpack.c.b16 %v2112, %v2110
  %v2213 = vpack.c.b16 %v2115, %v2113
  %v2214 = vpack.c.b16 %v2116, %v2114
  %v2215 = vpack.c.b16 %v2119, %v2117
  %v2216 = vpack.c.b16 %v2120, %v2118
  %2313 = vmatprep.subr.bf16.mxu0 %v2122
  %2314 = vmatpush1.bf16.msra.mxu0 %v2121
  %2315 = vmatprep.subr.bf16.mxu0 %v2124
  %2316 = vmatpush1.bf16.msra.mxu0 %v2123
  %2317 = vmatprep.subr.bf16.mxu0 %v2126
  %2318 = vmatpush1.bf16.msra.mxu0 %v2125
  %2319 = vmatprep.subr.bf16.mxu0 %v2128
  %2320 = vmatpush1.bf16.msra.mxu0 %v2127
  %2321 = vmatprep.subr.bf16.mxu0 %v2130
  %2322 = vmatpush1.bf16.msra.mxu0 %v2129
  %2323 = vmatprep.subr.bf16.mxu0 %v2132
  %2324 = vmatpush1.bf16.msra.mxu0 %v2131
  %2325 = vmatprep.subr.bf16.mxu0 %v2134
  %2326 = vmatpush1.bf16.msra.mxu0 %v2133
  %2327 = vmatprep.subr.bf16.mxu0 %v2136
  %2328 = vmatpush1.bf16.msra.mxu0 %v2135
  %2329 = vmatprep.subr.bf16.mxu0 %v2138
  %2330 = vmatpush1.bf16.msra.mxu0 %v2137
  %2331 = vmatprep.subr.bf16.mxu0 %v2140
  %2332 = vmatpush1.bf16.msra.mxu0 %v2139
  %2333 = vmatprep.subr.bf16.mxu0 %v2142
  %2334 = vmatpush1.bf16.msra.mxu0 %v2141
  %2335 = vmatprep.subr.bf16.mxu0 %v2144
  %2336 = vmatpush1.bf16.msra.mxu0 %v2143
  %2337 = vmatprep.subr.bf16.mxu0 %v2146
  %2338 = vmatpush1.bf16.msra.mxu0 %v2145
  %2339 = vmatprep.subr.bf16.mxu0 %v2148
  %2340 = vmatpush1.bf16.msra.mxu0 %v2147
  %2341 = vmatprep.subr.bf16.mxu0 %v2150
  %2342 = vmatpush1.bf16.msra.mxu0 %v2149
  %2343 = vmatprep.subr.bf16.mxu0 %v2152
  %2344 = vmatpush1.bf16.msra.mxu0 %v2151
  %2345 = vmatprep.mubr.bf16.mxu0 %v1726
  %2346 = vmatmul.mubr.bf16.gmra.mrb[0].mxu0 %v1725
  %v2347 = vpop.f32.mrb[0].mxu0
  %v2348 = vadd.f32 0.0, %v2347
  %v2349 = vpop.f32.mrb[0].mxu0
  %v2350 = vadd.f32 0.0, %v2349
  %v2351 = vpop.f32.mrb[0].mxu0
  %v2352 = vadd.f32 0.0, %v2351
  %v2353 = vpop.f32.mrb[0].mxu0
  %v2354 = vadd.f32 0.0, %v2353
  %2355 = vmatprep.mubr.bf16.mxu0 %v1732
  %2356 = vmatmul.mubr.bf16.gmra.mrb[0].mxu0 %v1731
  %v2357 = vpop.f32.mrb[0].mxu0
  %v2358 = vadd.f32 0.0, %v2357
  %v2359 = vpop.f32.mrb[0].mxu0
  %v2360 = vadd.f32 0.0, %v2359
  %v2361 = vpop.f32.mrb[0].mxu0
  %v2362 = vadd.f32 0.0, %v2361
  %v2363 = vpop.f32.mrb[0].mxu0
  %v2364 = vadd.f32 0.0, %v2363
  %2365 = vdwg.mxu0
  %2366 = vmatprep.subr.bf16.mxu0 %v2154
  %2367 = vmatpush1.bf16.msra.mxu0 %v2153
  %2368 = vmatprep.subr.bf16.mxu0 %v2156
  %2369 = vmatpush1.bf16.msra.mxu0 %v2155
  %2370 = vmatprep.subr.bf16.mxu0 %v2158
  %2371 = vmatpush1.bf16.msra.mxu0 %v2157
  %2372 = vmatprep.subr.bf16.mxu0 %v2160
  %2373 = vmatpush1.bf16.msra.mxu0 %v2159
  %2374 = vmatprep.subr.bf16.mxu0 %v2162
  %2375 = vmatpush1.bf16.msra.mxu0 %v2161
  %2376 = vmatprep.subr.bf16.mxu0 %v2164
  %2377 = vmatpush1.bf16.msra.mxu0 %v2163
  %2378 = vmatprep.subr.bf16.mxu0 %v2166
  %2379 = vmatpush1.bf16.msra.mxu0 %v2165
  %2380 = vmatprep.subr.bf16.mxu0 %v2168
  %2381 = vmatpush1.bf16.msra.mxu0 %v2167
  %2382 = vmatprep.subr.bf16.mxu0 %v2170
  %2383 = vmatpush1.bf16.msra.mxu0 %v2169
  %2384 = vmatprep.subr.bf16.mxu0 %v2172
  %2385 = vmatpush1.bf16.msra.mxu0 %v2171
  %2386 = vmatprep.subr.bf16.mxu0 %v2174
  %2387 = vmatpush1.bf16.msra.mxu0 %v2173
  %2388 = vmatprep.subr.bf16.mxu0 %v2176
  %2389 = vmatpush1.bf16.msra.mxu0 %v2175
  %2390 = vmatprep.subr.bf16.mxu0 %v2178
  %2391 = vmatpush1.bf16.msra.mxu0 %v2177
  %2392 = vmatprep.subr.bf16.mxu0 %v2180
  %2393 = vmatpush1.bf16.msra.mxu0 %v2179
  %2394 = vmatprep.subr.bf16.mxu0 %v2182
  %2395 = vmatpush1.bf16.msra.mxu0 %v2181
  %2396 = vmatprep.subr.bf16.mxu0 %v2184
  %2397 = vmatpush1.bf16.msra.mxu0 %v2183
  %2398 = vmatprep.mubr.bf16.mxu0 %v1728
  %2399 = vmatmul.mubr.bf16.gmra.mrb[0].mxu0 %v1727
  %v2400 = vpop.f32.mrb[0].mxu0
  %v2401 = vadd.f32 %v2348, %v2400
  %v2402 = vpop.f32.mrb[0].mxu0
  %v2403 = vadd.f32 %v2350, %v2402
  %v2404 = vpop.f32.mrb[0].mxu0
  %v2405 = vadd.f32 %v2352, %v2404
  %v2406 = vpop.f32.mrb[0].mxu0
  %v2407 = vadd.f32 %v2354, %v2406
  %2408 = vmatprep.mubr.bf16.mxu0 %v1734
  %2409 = vmatmul.mubr.bf16.gmra.mrb[0].mxu0 %v1733
  %v2410 = vpop.f32.mrb[0].mxu0
  %v2411 = vadd.f32 %v2358, %v2410
  %v2412 = vpop.f32.mrb[0].mxu0
  %v2413 = vadd.f32 %v2360, %v2412
  %v2414 = vpop.f32.mrb[0].mxu0
  %v2415 = vadd.f32 %v2362, %v2414
  %v2416 = vpop.f32.mrb[0].mxu0
  %v2417 = vadd.f32 %v2364, %v2416
  %2418 = vdwg.mxu0
  %2419 = vmatprep.subr.bf16.mxu0 %v2186
  %2420 = vmatpush1.bf16.msra.mxu0 %v2185
  %2421 = vmatprep.subr.bf16.mxu0 %v2188
  %2422 = vmatpush1.bf16.msra.mxu0 %v2187
  %2423 = vmatprep.subr.bf16.mxu0 %v2190
  %2424 = vmatpush1.bf16.msra.mxu0 %v2189
  %2425 = vmatprep.subr.bf16.mxu0 %v2192
  %2426 = vmatpush1.bf16.msra.mxu0 %v2191
  %2427 = vmatprep.subr.bf16.mxu0 %v2194
  %2428 = vmatpush1.bf16.msra.mxu0 %v2193
  %2429 = vmatprep.subr.bf16.mxu0 %v2196
  %2430 = vmatpush1.bf16.msra.mxu0 %v2195
  %2431 = vmatprep.subr.bf16.mxu0 %v2198
  %2432 = vmatpush1.bf16.msra.mxu0 %v2197
  %2433 = vmatprep.subr.bf16.mxu0 %v2200
  %2434 = vmatpush1.bf16.msra.mxu0 %v2199
  %2435 = vmatprep.subr.bf16.mxu0 %v2202
  %2436 = vmatpush1.bf16.msra.mxu0 %v2201
  %2437 = vmatprep.subr.bf16.mxu0 %v2204
  %2438 = vmatpush1.bf16.msra.mxu0 %v2203
  %2439 = vmatprep.subr.bf16.mxu0 %v2206
  %2440 = vmatpush1.bf16.msra.mxu0 %v2205
  %2441 = vmatprep.subr.bf16.mxu0 %v2208
  %2442 = vmatpush1.bf16.msra.mxu0 %v2207
  %2443 = vmatprep.subr.bf16.mxu0 %v2210
  %2444 = vmatpush1.bf16.msra.mxu0 %v2209
  %2445 = vmatprep.subr.bf16.mxu0 %v2212
  %2446 = vmatpush1.bf16.msra.mxu0 %v2211
  %2447 = vmatprep.subr.bf16.mxu0 %v2214
  %2448 = vmatpush1.bf16.msra.mxu0 %v2213
  %2449 = vmatprep.subr.bf16.mxu0 %v2216
  %2450 = vmatpush1.bf16.msra.mxu0 %v2215
  %2451 = vmatprep.mubr.bf16.mxu0 %v1730
  %2452 = vmatmul.mubr.bf16.gmra.mrb[0].mxu0 %v1729
  %v2453 = vpop.f32.mrb[0].mxu0
  %v2454 = vadd.f32 %v2401, %v2453
  %v2455 = vpop.f32.mrb[0].mxu0
  %v2456 = vadd.f32 %v2403, %v2455
  %v2457 = vpop.f32.mrb[0].mxu0
  %v2458 = vadd.f32 %v2405, %v2457
  %v2459 = vpop.f32.mrb[0].mxu0
  %v2460 = vadd.f32 %v2407, %v2459
  %2461 = vmatprep.mubr.bf16.mxu0 %v1736
  %2462 = vmatmul.mubr.bf16.gmra.mrb[0].mxu0 %v1735
  %v2463 = vpop.f32.mrb[0].mxu0
  %v2464 = vadd.f32 %v2411, %v2463
  %v2465 = vpop.f32.mrb[0].mxu0
  %v2466 = vadd.f32 %v2413, %v2465
  %v2467 = vpop.f32.mrb[0].mxu0
  %v2468 = vadd.f32 %v2415, %v2467
  %v2469 = vpop.f32.mrb[0].mxu0
  %v2470 = vadd.f32 %v2417, %v2469
  %2471 = vdwg.mxu0
  %v2472 = vadd.f32 %v2454, %v2458
  %v2473 = vadd.f32 %v2472, %v2464
  %v2474 = vadd.f32 %v2473, %v2468
  %v2475 = vrot.slane %v2474, 4
  %v2476 = vadd.f32 %v2474, %v2475
  %v2477 = vrot.slane %v2476, 2
  %v2478 = vadd.f32 %v2476, %v2477
  %v2479 = vrot.slane %v2478, 1
  %v2480 = vadd.f32 %v2478, %v2479
  %v2481 = vadd.f32 %v2456, %v2460
  %v2482 = vadd.f32 %v2481, %v2466
  %v2483 = vadd.f32 %v2482, %v2470
  %v2484 = vrot.slane %v2483, 4
  %v2485 = vadd.f32 %v2483, %v2484
  %v2486 = vrot.slane %v2485, 2
  %v2487 = vadd.f32 %v2485, %v2486
  %v2488 = vrot.slane %v2487, 1
  %v2489 = vadd.f32 %v2487, %v2488
  %v2490 = vmul.f32 %v2454, %v2454
  %v2491 = vmul.f32 %v2456, %v2456
  %v2492 = vmul.f32 %v2458, %v2458
  %v2493 = vmul.f32 %v2460, %v2460
  %v2494 = vmul.f32 %v2464, %v2464
  %v2495 = vmul.f32 %v2466, %v2466
  %v2496 = vmul.f32 %v2468, %v2468
  %v2497 = vmul.f32 %v2470, %v2470
  %v2498 = vadd.f32 %v2490, %v2492
  %v2499 = vadd.f32 %v2498, %v2494
  %v2500 = vadd.f32 %v2499, %v2496
  %v2501 = vrot.slane %v2500, 4
  %v2502 = vadd.f32 %v2500, %v2501
  %v2503 = vrot.slane %v2502, 2
  %v2504 = vadd.f32 %v2502, %v2503
  %v2505 = vrot.slane %v2504, 1
  %v2506 = vadd.f32 %v2504, %v2505
  %v2507 = vadd.f32 %v2491, %v2493
  %v2508 = vadd.f32 %v2507, %v2495
  %v2509 = vadd.f32 %v2508, %v2497
  %v2510 = vrot.slane %v2509, 4
  %v2511 = vadd.f32 %v2509, %v2510
  %v2512 = vrot.slane %v2511, 2
  %v2513 = vadd.f32 %v2511, %v2512
  %v2514 = vrot.slane %v2513, 1
  %v2515 = vadd.f32 %v2513, %v2514
  %v2516 = vsel %vm1451, %v2480, %v2506
  %v2517 = vsel %vm1451, %v2489, %v2515
  %2518 = vmatprep.subr.mxu0 0.0
  %2519 = vmatpush1.msra.mxu0 %v541
  %2520 = vmatprep.subr.mxu0 0.0
  %2521 = vmatpush1.msra.mxu0 %v542
  %2522 = vmatprep.subr.mxu0 0.0
  %2523 = vmatpush1.msra.mxu0 %v543
  %2524 = vmatprep.subr.mxu0 0.0
  %2525 = vmatpush1.msra.mxu0 %v544
  %2526 = vmatprep.subr.mxu0 0.0
  %2527 = vmatpush1.msra.mxu0 %v545
  %2528 = vmatprep.subr.mxu0 0.0
  %2529 = vmatpush1.msra.mxu0 %v546
  %2530 = vmatprep.subr.mxu0 0.0
  %2531 = vmatpush1.msra.mxu0 %v547
  %2532 = vmatprep.subr.mxu0 0.0
  %2533 = vmatpush1.msra.mxu0 %v548
  %2534 = vmatprep.subr.mxu0 0.0
  %2535 = vmatpush1.msra.mxu0 %v549
  %2536 = vmatprep.subr.mxu0 0.0
  %2537 = vmatpush1.msra.mxu0 %v550
  %2538 = vmatprep.subr.mxu0 0.0
  %2539 = vmatpush1.msra.mxu0 %v551
  %2540 = vmatprep.subr.mxu0 0.0
  %2541 = vmatpush1.msra.mxu0 %v552
  %2542 = vmatprep.subr.mxu0 0.0
  %2543 = vmatpush1.msra.mxu0 %v553
  %2544 = vmatprep.subr.mxu0 0.0
  %2545 = vmatpush1.msra.mxu0 %v554
  %2546 = vmatprep.subr.mxu0 0.0
  %2547 = vmatpush1.msra.mxu0 %v555
  %2548 = vmatprep.subr.mxu0 0.0
  %2549 = vmatpush1.msra.mxu0 %v556
  %2550 = vmatprep.subr.mxu0 0.0
  %2551 = vmatpush1.msra.mxu0 %v557
  %2552 = vmatprep.subr.mxu0 0.0
  %2553 = vmatpush1.msra.mxu0 %v558
  %2554 = vmatprep.subr.mxu0 0.0
  %2555 = vmatpush1.msra.mxu0 %v559
  %2556 = vmatprep.subr.mxu0 0.0
  %2557 = vmatpush1.msra.mxu0 %v560
  %2558 = vmatprep.subr.mxu0 0.0
  %2559 = vmatpush1.msra.mxu0 %v561
  %2560 = vmatprep.subr.mxu0 0.0
  %2561 = vmatpush1.msra.mxu0 %v562
  %2562 = vmatprep.subr.mxu0 0.0
  %2563 = vmatpush1.msra.mxu0 %v563
  %2564 = vmatprep.subr.mxu0 0.0
  %2565 = vmatpush1.msra.mxu0 %v564
  %2566 = vmatprep.subr.mxu0 0.0
  %2567 = vmatpush1.msra.mxu0 %v565
  %2568 = vmatprep.subr.mxu0 0.0
  %2569 = vmatpush1.msra.mxu0 %v566
  %2570 = vmatprep.subr.mxu0 0.0
  %2571 = vmatpush1.msra.mxu0 %v567
  %2572 = vmatprep.subr.mxu0 0.0
  %2573 = vmatpush1.msra.mxu0 %v568
  %2574 = vmatprep.subr.mxu0 0.0
  %2575 = vmatpush1.msra.mxu0 %v569
  %2576 = vmatprep.subr.mxu0 0.0
  %2577 = vmatpush1.msra.mxu0 %v570
  %2578 = vmatprep.subr.mxu0 0.0
  %2579 = vmatpush1.msra.mxu0 %v571
  %2580 = vmatprep.subr.mxu0 0.0
  %2581 = vmatpush1.msra.mxu0 %v572
  %2582 = vmatprep.mubr.f32.mxu0 %v2517
  %2583 = vmatmul.mubr.f32.gmra.mrb[0].mxu0 %v2516
  %v2584 = vpop.f32.mrb[0].mxu0
  %v2585 = vadd.f32 0.0, %v2584
  %v2586 = vpop.f32.mrb[0].mxu0
  %2587 = vdwg.mxu0
  %v2588 = vmul.f32 %v2585, 0.001953125
  %v2589 = vmul.f32 %v2588, %v2588
  %v2591 = vrot.slane %v2589, 7
  %v2593 = vsub.f32 %v2588, %v2591
  %v2594 = vmax.f32 %v2593, 0.0
  %v2595 = vld [vmem:[%s5] sm:$0x1]
  %v2596 = vadd.f32 %v2594, 1e-05
  %v2597 = vrsqrt.pop %v2596
  %v2600 = vunpack.c.l.s4 1966171168
  %v2601 = vunpack.c.0.s8 %v2600
  %v2602 = vlaneseq
  %v2603 = vshrl.u32 %v2602, 7
  %v2604 = vsub.s32 %v2601, %v2603
  %v2605 = vrot.slane %v2597, %v2604
  %v2606 = vcombine.high %v2605, %v2605
  %v2608 = vunpack.c.l.s4 1966171168
  %v2609 = vunpack.c.0.s8 %v2608
  %v2610 = vlaneseq
  %v2611 = vshrl.u32 %v2610, 7
  %v2612 = vsub.s32 %v2609, %v2611
  %v2613 = vrot.slane %v2606, %v2612
  %v2615 = vmul.f32 %v2595, %v2613
  %v2616 = vld [vmem:[%s6] sm:$0x1]
  %v2617 = vmul.f32 %v2588, %v2615
  %v2618 = vsub.f32 %v2616, %v2617
  %v2620 = vlaneseq
  %v2621 = vshrl.u32 %v2620, 7
  %v2622 = vsub.s32 0, %v2621
  %v2623 = vrot.slane %v2618, %v2622
  %v2625 = vsel %vm1451, %v2615, %v2623
  %v2627 = vsel %vm1562, %v2625, 0
  %2629 = vmatprep.subr.mxu0 %v607
  %2630 = vmatpush1.msra.mxu0 %v606
  %2631 = vmatprep.subr.mxu0 %v609
  %2632 = vmatpush1.msra.mxu0 %v608
  %2633 = vmatprep.subr.mxu0 0.0
  %2634 = vmatpush1.msra.mxu0 0.0
  %2635 = vmatprep.subr.mxu0 0.0
  %2636 = vmatpush1.msra.mxu0 0.0
  %2637 = vmatprep.subr.mxu0 0.0
  %2638 = vmatpush1.msra.mxu0 0.0
  %2639 = vmatprep.subr.mxu0 0.0
  %2640 = vmatpush1.msra.mxu0 0.0
  %2641 = vmatprep.subr.mxu0 0.0
  %2642 = vmatpush1.msra.mxu0 0.0
  %2643 = vmatprep.subr.mxu0 0.0
  %2644 = vmatpush1.msra.mxu0 0.0
  %2645 = vmatprep.subr.mxu0 0.0
  %2646 = vmatpush1.msra.mxu0 0.0
  %2647 = vmatprep.subr.mxu0 0.0
  %2648 = vmatpush1.msra.mxu0 0.0
  %2649 = vmatprep.subr.mxu0 0.0
  %2650 = vmatpush1.msra.mxu0 0.0
  %2651 = vmatprep.subr.mxu0 0.0
  %2652 = vmatpush1.msra.mxu0 0.0
  %2653 = vmatprep.subr.mxu0 0.0
  %2654 = vmatpush1.msra.mxu0 0.0
  %2655 = vmatprep.subr.mxu0 0.0
  %2656 = vmatpush1.msra.mxu0 0.0
  %2657 = vmatprep.subr.mxu0 0.0
  %2658 = vmatpush1.msra.mxu0 0.0
  %2659 = vmatprep.subr.mxu0 0.0
  %2660 = vmatpush1.msra.mxu0 0.0
  %2661 = vmatprep.subr.mxu0 0.0
  %2662 = vmatpush1.msra.mxu0 0.0
  %2663 = vmatprep.subr.mxu0 0.0
  %2664 = vmatpush1.msra.mxu0 0.0
  %2665 = vmatprep.subr.mxu0 0.0
  %2666 = vmatpush1.msra.mxu0 0.0
  %2667 = vmatprep.subr.mxu0 0.0
  %2668 = vmatpush1.msra.mxu0 0.0
  %2669 = vmatprep.subr.mxu0 0.0
  %2670 = vmatpush1.msra.mxu0 0.0
  %2671 = vmatprep.subr.mxu0 0.0
  %2672 = vmatpush1.msra.mxu0 0.0
  %2673 = vmatprep.subr.mxu0 0.0
  %2674 = vmatpush1.msra.mxu0 0.0
  %2675 = vmatprep.subr.mxu0 0.0
  %2676 = vmatpush1.msra.mxu0 0.0
  %2677 = vmatprep.subr.mxu0 0.0
  %2678 = vmatpush1.msra.mxu0 0.0
  %2679 = vmatprep.subr.mxu0 0.0
  %2680 = vmatpush1.msra.mxu0 0.0
  %2681 = vmatprep.subr.mxu0 0.0
  %2682 = vmatpush1.msra.mxu0 0.0
  %2683 = vmatprep.subr.mxu0 0.0
  %2684 = vmatpush1.msra.mxu0 0.0
  %2685 = vmatprep.subr.mxu0 0.0
  %2686 = vmatpush1.msra.mxu0 0.0
  %2687 = vmatprep.subr.mxu0 0.0
  %2688 = vmatpush1.msra.mxu0 0.0
  %2689 = vmatprep.subr.mxu0 0.0
  %2690 = vmatpush1.msra.mxu0 0.0
  %2691 = vmatprep.subr.mxu0 0.0
  %2692 = vmatpush1.msra.mxu0 0.0
  %2693 = vmatprep.mubr.f32.mxu0 0.0
  %2694 = vmatmul.mubr.f32.gmra.mrb[0].mxu0 %v2627
  %v2695 = vpop.f32.mrb[0].mxu0
  %v2696 = vadd.f32 0.0, %v2695
  %v2697 = vpop.f32.mrb[0].mxu0
  %v2698 = vadd.f32 0.0, %v2697
  %2699 = vdwg.mxu0
  %v2700 = vlaneseq
  %v2701 = vshrl.u32 %v2700, 7
  %v2702 = vsub.s32 0, %v2701
  %v2703 = vrot.slane %v2696, %v2702
  %v2704 = vlaneseq
  %v2705 = vshrl.u32 %v2704, 7
  %v2706 = vsub.s32 0, %v2705
  %v2707 = vrot.slane %v2698, %v2706
  %v2708 = vmul.f32 %v2454, %v2703
  %v2709 = vmul.f32 %v2456, %v2707
  %v2710 = vmul.f32 %v2458, %v2703
  %v2711 = vmul.f32 %v2460, %v2707
  %v2712 = vmul.f32 %v2464, %v2703
  %v2713 = vmul.f32 %v2466, %v2707
  %v2714 = vmul.f32 %v2468, %v2703
  %v2715 = vmul.f32 %v2470, %v2707
  %v2716 = vlaneseq
  %v2717 = vshrl.u32 %v2716, 7
  %v2718 = vsub.s32 1, %v2717
  %v2719 = vrot.slane %v2696, %v2718
  %v2720 = vlaneseq
  %v2721 = vshrl.u32 %v2720, 7
  %v2722 = vsub.s32 1, %v2721
  %v2723 = vrot.slane %v2698, %v2722
  %v2724 = vadd.f32 %v2708, %v2719
  %v2725 = vadd.f32 %v2709, %v2723
  %v2726 = vadd.f32 %v2710, %v2719
  %v2727 = vadd.f32 %v2711, %v2723
  %v2728 = vadd.f32 %v2712, %v2719
  %v2729 = vadd.f32 %v2713, %v2723
  %v2730 = vadd.f32 %v2714, %v2719
  %v2731 = vadd.f32 %v2715, %v2723
  %v2732 = vadd.f32 %v2724, %v26
  %v2733 = vadd.f32 %v2725, %v27
  %v2734 = vadd.f32 %v2726, %v28
  %v2735 = vadd.f32 %v2727, %v29
  %v2736 = vadd.f32 %v2728, %v30
  %v2737 = vadd.f32 %v2729, %v31
  %v2738 = vadd.f32 %v2730, %v32
  %v2739 = vadd.f32 %v2731, %v33
  %v2740 = vmax.f32 %v2732, 0.0
  %v2741 = vmax.f32 %v2733, 0.0
  %v2742 = vmax.f32 %v2734, 0.0
  %v2743 = vmax.f32 %v2735, 0.0
  %v2744 = vmax.f32 %v2736, 0.0
  %v2745 = vmax.f32 %v2737, 0.0
  %v2746 = vmax.f32 %v2738, 0.0
  %v2747 = vmax.f32 %v2739, 0.0
  %2748 = vst [vmem:[%s7] sm:$0xff] %v2740
  %2749 = vst [vmem:[%s7 + $0x8] sm:$0xff] %v2741
  %2750 = vst [vmem:[%s7 + $0x10] sm:$0xff] %v2742
  %2751 = vst [vmem:[%s7 + $0x18] sm:$0xff] %v2743
  %2752 = vst [vmem:[%s7 + $0x20] sm:$0xff] %v2744
  %2753 = vst [vmem:[%s7 + $0x28] sm:$0xff] %v2745
  %2754 = vst [vmem:[%s7 + $0x30] sm:$0xff] %v2746
  %2755 = vst [vmem:[%s7 + $0x38] sm:$0xff] %v2747
  // Predicated region
  $region30: #{basic_block_forward_nhwc.1} parent=0 // pred_check
    _
  $region31: #{basic_block_forward_nhwc.1} parent=0 // pred_check_branch
    %2757 = sbr.rel (0) target = $region33
  $region32: #{basic_block_forward_nhwc.1} parent=0 // pred_region
    _
  $region33: #{basic_block_forward_nhwc.1} parent=0 // pred_fallthru
    _
  // Predicated region
  $region34: #{basic_block_forward_nhwc.1} parent=0 // pred_check
    _
  $region35: #{basic_block_forward_nhwc.1} parent=0 // pred_check_branch
    %2759 = sbr.rel (0) target = $region37
  $region36: #{basic_block_forward_nhwc.1} parent=0 // pred_region
    _
  $region37: #{basic_block_forward_nhwc.1} parent=0 // pred_fallthru
    _

</llo_original>
